<compile_context>
chip_gen: v7x
topology: tpu7x:2x2x1
jax: 0.10.0
libtpu: 0.0.40
codegen_flags: <defaults>
</compile_context>

<pallas_src>
import jax
import jax.numpy as jnp
from jax.experimental import pallas as pl
from jax.experimental.pallas import tpu as pltpu

HIDDEN = 50
N_LAYERS = 10              # 1->50, 8x(50->50), 50->1
PAD = 64                   # padded feature width (sublane axis in-kernel); row HIDDEN = bias lane
TILE_B = 256               # samples per grid step (lane axis) -> one full-width MXU pass per layer
NEG_SLOPE = 0.01           # nn.LeakyReLU default


def _leaky(h):
    return jnp.where(h > 0, h, NEG_SLOPE * h)


def mlp_kernel(x_ref, w0_ref, b0_ref, wh_ref, o_ref):
    """Fused 10-layer MLP forward for one batch tile.

    x_ref:  (1, 1, TILE_B)            lane-dense scalar inputs
    w0_ref: (PAD, 1)  f32             layer-0 weight column (Linear(1,50))
    b0_ref: (PAD, 1)  f32             layer-0 bias column; row HIDDEN holds the constant 1
    wh_ref: (N_LAYERS-1, PAD, PAD)    bf16 hidden+output weights, bias folded into column HIDDEN
    o_ref:  (1, 1, TILE_B)            lane-dense scalar outputs
    """
    x_row = x_ref[0]                                  # (1, TILE_B) f32

    # ---- layer 0: Linear(1, 50) as broadcast FMA + LeakyReLU (exact f32, VPU only) ----
    # Row HIDDEN of b0 is 1.0 and row HIDDEN of w0 is 0, so h[HIDDEN, :] == 1: the bias lane
    # that carries the folded biases through the rest of the network (LeakyReLU(1) == 1).
    h = _leaky(w0_ref[...] * x_row + b0_ref[...])     # (PAD, TILE_B) f32

    # ---- layers 1..8: Linear(50, 50) + LeakyReLU, one bf16 MXU matmul per layer ----
    # Bias is W_i[:, HIDDEN] * h[HIDDEN, :] (== bias), so no separate VPU add is needed.
    for i in range(N_LAYERS - 2):
        h = _leaky(jnp.dot(wh_ref[i], h.astype(jnp.bfloat16),
                           preferred_element_type=jnp.float32))

    # ---- layer 9: Linear(50, 1) -> only output feature 0 is real ----
    y = jnp.dot(wh_ref[N_LAYERS - 2], h.astype(jnp.bfloat16),
                preferred_element_type=jnp.float32)   # (PAD, TILE_B) f32
    o_ref[0] = y[0:1, :]                              # lane-dense (1, TILE_B) store


def init_params(key):
    """PyTorch-style init (U(-1/sqrt(fan_in), 1/sqrt(fan_in)), (out, in) layout).

    Returns raw f32 (ws, bs) for the references plus the packed kernel params:
      w0_pad (PAD,1) f32, b0_pad (PAD,1) f32 (with the constant-1 bias lane),
      wh_stack (N_LAYERS-1, PAD, PAD) bf16 with biases folded into column HIDDEN.
    """
    dims = [1] + [HIDDEN] * (N_LAYERS - 1) + [1]
    ws, bs = [], []
    for i in range(N_LAYERS):
        fan_in, fan_out = dims[i], dims[i + 1]
        key, kw, kb = jax.random.split(key, 3)
        bound = float(fan_in) ** -0.5
        ws.append(jax.random.uniform(kw, (fan_out, fan_in), jnp.float32, -bound, bound))
        bs.append(jax.random.uniform(kb, (fan_out,), jnp.float32, -bound, bound))

    # layer 0 packed in f32 (exact)
    w0_pad = jnp.zeros((PAD, 1), jnp.float32).at[:HIDDEN, 0].set(ws[0][:, 0])
    b0_pad = (jnp.zeros((PAD, 1), jnp.float32)
              .at[:HIDDEN, 0].set(bs[0])
              .at[HIDDEN, 0].set(1.0))               # constant-1 bias lane seed

    # layers 1..9 packed in bf16 with bias folded into column HIDDEN
    whs = []
    for i in range(1, N_LAYERS):
        fan_out = dims[i + 1]
        wp = (jnp.zeros((PAD, PAD), jnp.float32)
              .at[:fan_out, :HIDDEN].set(ws[i])
              .at[:fan_out, HIDDEN].set(bs[i]))
        if i < N_LAYERS - 1:
            wp = wp.at[HIDDEN, HIDDEN].set(1.0)      # keep bias lane alive layer-to-layer
        whs.append(wp)
    wh_stack = jnp.stack(whs).astype(jnp.bfloat16)

    return ws, bs, w0_pad, b0_pad, wh_stack


def mlp_forward(x, w0_pad, b0_pad, wh_stack):
    """x: (N, 1) float32 -> (N, 1) float32."""
    n = x.shape[0]
    num_tiles = pl.cdiv(n, TILE_B)
    n_pad = num_tiles * TILE_B
    xp = (jnp.zeros((n_pad,), jnp.float32)
          .at[:n].set(x[:, 0])
          .reshape(num_tiles, 1, TILE_B))

    out = pl.pallas_call(
        mlp_kernel,
        out_shape=jax.ShapeDtypeStruct((num_tiles, 1, TILE_B), jnp.float32),
        grid=(num_tiles,),
        in_specs=[
            pl.BlockSpec((1, 1, TILE_B), lambda i: (i, 0, 0)),               # per-tile inputs
            pl.BlockSpec((PAD, 1), lambda i: (0, 0)),                        # layer-0 weight (resident)
            pl.BlockSpec((PAD, 1), lambda i: (0, 0)),                        # layer-0 bias   (resident)
            pl.BlockSpec((N_LAYERS - 1, PAD, PAD), lambda i: (0, 0, 0)),     # bf16 weights   (resident)
        ],
        out_specs=pl.BlockSpec((1, 1, TILE_B), lambda i: (i, 0, 0)),
        compiler_params=pltpu.CompilerParams(
            dimension_semantics=("parallel",)),                              # megacore on v7x
    )(xp, w0_pad, b0_pad, wh_stack)

    return out.reshape(n_pad)[:n][:, None]


def mlp_reference_matched(x, ws, bs):
    """Plain-JAX reference mirroring the kernel's numerics (bf16 operands, f32 accumulation)."""
    h = x @ ws[0].T + bs[0][None, :]
    h = _leaky(h)
    for i in range(1, N_LAYERS):
        wb = ws[i].astype(jnp.bfloat16)
        bb = bs[i].astype(jnp.bfloat16).astype(jnp.float32)
        h = jnp.dot(h.astype(jnp.bfloat16), wb.T,
                    preferred_element_type=jnp.float32) + bb[None, :]
        if i < N_LAYERS - 1:
            h = _leaky(h)
    return h


def mlp_reference_f32(x, ws, bs):
    """Pure-f32 PyTorch-semantics reference (loose comparison: bf16 input rounding only)."""
    h = x
    for i in range(N_LAYERS):
        h = h @ ws[i].T + bs[i][None, :]
        if i < N_LAYERS - 1:
            h = _leaky(h)
    return h


if __name__ == "__main__":
    key = jax.random.PRNGKey(0)
    key, kx1, kx2 = jax.random.split(key, 3)
    ws, bs, w0_pad, b0_pad, wh_stack = init_params(key)

    # small batch (matches the toy regression use-case)
    x_small = jax.random.normal(kx1, (8, 1), jnp.float32)
    y_small = jax.block_until_ready(mlp_forward(x_small, w0_pad, b0_pad, wh_stack))
    assert y_small.shape == (8, 1)
    assert jnp.allclose(y_small, mlp_reference_matched(x_small, ws, bs), atol=2e-3, rtol=2e-2)
    assert jnp.allclose(y_small, mlp_reference_f32(x_small, ws, bs), atol=5e-2, rtol=5e-2)

    # larger batch exercising multiple grid steps (4 tiles -> both v7x TCs) + ragged padding
    x_big = jax.random.normal(kx2, (1000, 1), jnp.float32)
    y_big = jax.block_until_ready(mlp_forward(x_big, w0_pad, b0_pad, wh_stack))
    assert y_big.shape == (1000, 1)
    assert jnp.allclose(y_big, mlp_reference_matched(x_big, ws, bs), atol=2e-3, rtol=2e-2)
    assert jnp.allclose(y_big, mlp_reference_f32(x_big, ws, bs), atol=5e-2, rtol=5e-2)

    print("KERNEL_OK")
</pallas_src>

<mosaic_0001>
module attributes {stable_mosaic.version = 11 : i64} {
  func.func @mlp_kernel(%arg0: i32, %arg1: memref<1x1x256xf32, #tpu.memory_space<vmem>>, %arg2: memref<64x1xf32, #tpu.memory_space<vmem>>, %arg3: memref<64x1xf32, #tpu.memory_space<vmem>>, %arg4: memref<9x64x64xbf16, #tpu.memory_space<vmem>>, %arg5: memref<1x1x256xf32, #tpu.memory_space<vmem>>) attributes {dimension_semantics = [#tpu.dimension_semantics<parallel>], iteration_bounds = array<i64: 1>, scalar_prefetch = 0 : i64, scratch_operands = 0 : i64, tpu.core_type = #tpu.core_type<tc>, window_params = [{transform_indices = @transform_0, window_bounds = array<i64: 1, 1, 256>}, {pipeline_mode = #tpu.pipeline_mode<synchronous>, transform_indices = @transform_1, window_bounds = array<i64: 64, 1>}, {pipeline_mode = #tpu.pipeline_mode<synchronous>, transform_indices = @transform_2, window_bounds = array<i64: 64, 1>}, {pipeline_mode = #tpu.pipeline_mode<synchronous>, transform_indices = @transform_3, window_bounds = array<i64: 9, 64, 64>}, {transform_indices = @transform_4, window_bounds = array<i64: 1, 1, 256>}]} {
    %c0 = arith.constant 0 : index
    %c0_0 = arith.constant 0 : index
    %c0_1 = arith.constant 0 : index
    %0 = vector.load %arg1[%c0, %c0_0, %c0_1] : memref<1x1x256xf32, #tpu.memory_space<vmem>>, vector<1x1x256xf32>
    %1 = vector.shape_cast %0 : vector<1x1x256xf32> to vector<1x256xf32>
    %c0_2 = arith.constant 0 : index
    %c0_3 = arith.constant 0 : index
    %2 = vector.load %arg2[%c0_2, %c0_3] : memref<64x1xf32, #tpu.memory_space<vmem>>, vector<64x1xf32>
    %3 = vector.broadcast %2 : vector<64x1xf32> to vector<64x256xf32>
    %4 = vector.broadcast %1 : vector<1x256xf32> to vector<64x256xf32>
    %5 = arith.mulf %3, %4 : vector<64x256xf32>
    %c0_4 = arith.constant 0 : index
    %c0_5 = arith.constant 0 : index
    %6 = vector.load %arg3[%c0_4, %c0_5] : memref<64x1xf32, #tpu.memory_space<vmem>>, vector<64x1xf32>
    %7 = vector.broadcast %6 : vector<64x1xf32> to vector<64x256xf32>
    %8 = arith.addf %5, %7 : vector<64x256xf32>
    %cst = arith.constant 0.000000e+00 : f32
    %9 = vector.broadcast %cst : f32 to vector<64x256xf32>
    %10 = arith.cmpf ogt, %8, %9 : vector<64x256xf32>
    %cst_6 = arith.constant 0.00999999977 : f32
    %11 = vector.broadcast %cst_6 : f32 to vector<64x256xf32>
    %12 = arith.mulf %11, %8 : vector<64x256xf32>
    %13 = arith.select %10, %8, %12 : vector<64x256xi1>, vector<64x256xf32>
    %c0_7 = arith.constant 0 : index
    %c0_8 = arith.constant 0 : index
    %c0_9 = arith.constant 0 : index
    %14 = vector.load %arg4[%c0_7, %c0_8, %c0_9] : memref<9x64x64xbf16, #tpu.memory_space<vmem>>, vector<1x64x64xbf16>
    %15 = vector.shape_cast %14 : vector<1x64x64xbf16> to vector<64x64xbf16>
    %16 = arith.truncf %13 : vector<64x256xf32> to vector<64x256xbf16>
    %cst_10 = arith.constant dense<0.000000e+00> : vector<64x256xf32>
    %17 = tpu.matmul %15, %16, %cst_10 {dimension_numbers = #tpu.dot_dimension_numbers<[1], [0], [0], [1], [0, 0, 1, 1], [], []>} : vector<64x64xbf16>, vector<64x256xbf16>, vector<64x256xf32> -> vector<64x256xf32>
    %cst_11 = arith.constant 0.000000e+00 : f32
    %18 = vector.broadcast %cst_11 : f32 to vector<64x256xf32>
    %19 = arith.cmpf ogt, %17, %18 : vector<64x256xf32>
    %cst_12 = arith.constant 0.00999999977 : f32
    %20 = vector.broadcast %cst_12 : f32 to vector<64x256xf32>
    %21 = arith.mulf %20, %17 : vector<64x256xf32>
    %22 = arith.select %19, %17, %21 : vector<64x256xi1>, vector<64x256xf32>
    %c1 = arith.constant 1 : index
    %c0_13 = arith.constant 0 : index
    %c0_14 = arith.constant 0 : index
    %23 = vector.load %arg4[%c1, %c0_13, %c0_14] : memref<9x64x64xbf16, #tpu.memory_space<vmem>>, vector<1x64x64xbf16>
    %24 = vector.shape_cast %23 : vector<1x64x64xbf16> to vector<64x64xbf16>
    %25 = arith.truncf %22 : vector<64x256xf32> to vector<64x256xbf16>
    %cst_15 = arith.constant dense<0.000000e+00> : vector<64x256xf32>
    %26 = tpu.matmul %24, %25, %cst_15 {dimension_numbers = #tpu.dot_dimension_numbers<[1], [0], [0], [1], [0, 0, 1, 1], [], []>} : vector<64x64xbf16>, vector<64x256xbf16>, vector<64x256xf32> -> vector<64x256xf32>
    %cst_16 = arith.constant 0.000000e+00 : f32
    %27 = vector.broadcast %cst_16 : f32 to vector<64x256xf32>
    %28 = arith.cmpf ogt, %26, %27 : vector<64x256xf32>
    %cst_17 = arith.constant 0.00999999977 : f32
    %29 = vector.broadcast %cst_17 : f32 to vector<64x256xf32>
    %30 = arith.mulf %29, %26 : vector<64x256xf32>
    %31 = arith.select %28, %26, %30 : vector<64x256xi1>, vector<64x256xf32>
    %c2 = arith.constant 2 : index
    %c0_18 = arith.constant 0 : index
    %c0_19 = arith.constant 0 : index
    %32 = vector.load %arg4[%c2, %c0_18, %c0_19] : memref<9x64x64xbf16, #tpu.memory_space<vmem>>, vector<1x64x64xbf16>
    %33 = vector.shape_cast %32 : vector<1x64x64xbf16> to vector<64x64xbf16>
    %34 = arith.truncf %31 : vector<64x256xf32> to vector<64x256xbf16>
    %cst_20 = arith.constant dense<0.000000e+00> : vector<64x256xf32>
    %35 = tpu.matmul %33, %34, %cst_20 {dimension_numbers = #tpu.dot_dimension_numbers<[1], [0], [0], [1], [0, 0, 1, 1], [], []>} : vector<64x64xbf16>, vector<64x256xbf16>, vector<64x256xf32> -> vector<64x256xf32>
    %cst_21 = arith.constant 0.000000e+00 : f32
    %36 = vector.broadcast %cst_21 : f32 to vector<64x256xf32>
    %37 = arith.cmpf ogt, %35, %36 : vector<64x256xf32>
    %cst_22 = arith.constant 0.00999999977 : f32
    %38 = vector.broadcast %cst_22 : f32 to vector<64x256xf32>
    %39 = arith.mulf %38, %35 : vector<64x256xf32>
    %40 = arith.select %37, %35, %39 : vector<64x256xi1>, vector<64x256xf32>
    %c3 = arith.constant 3 : index
    %c0_23 = arith.constant 0 : index
    %c0_24 = arith.constant 0 : index
    %41 = vector.load %arg4[%c3, %c0_23, %c0_24] : memref<9x64x64xbf16, #tpu.memory_space<vmem>>, vector<1x64x64xbf16>
    %42 = vector.shape_cast %41 : vector<1x64x64xbf16> to vector<64x64xbf16>
    %43 = arith.truncf %40 : vector<64x256xf32> to vector<64x256xbf16>
    %cst_25 = arith.constant dense<0.000000e+00> : vector<64x256xf32>
    %44 = tpu.matmul %42, %43, %cst_25 {dimension_numbers = #tpu.dot_dimension_numbers<[1], [0], [0], [1], [0, 0, 1, 1], [], []>} : vector<64x64xbf16>, vector<64x256xbf16>, vector<64x256xf32> -> vector<64x256xf32>
    %cst_26 = arith.constant 0.000000e+00 : f32
    %45 = vector.broadcast %cst_26 : f32 to vector<64x256xf32>
    %46 = arith.cmpf ogt, %44, %45 : vector<64x256xf32>
    %cst_27 = arith.constant 0.00999999977 : f32
    %47 = vector.broadcast %cst_27 : f32 to vector<64x256xf32>
    %48 = arith.mulf %47, %44 : vector<64x256xf32>
    %49 = arith.select %46, %44, %48 : vector<64x256xi1>, vector<64x256xf32>
    %c4 = arith.constant 4 : index
    %c0_28 = arith.constant 0 : index
    %c0_29 = arith.constant 0 : index
    %50 = vector.load %arg4[%c4, %c0_28, %c0_29] : memref<9x64x64xbf16, #tpu.memory_space<vmem>>, vector<1x64x64xbf16>
    %51 = vector.shape_cast %50 : vector<1x64x64xbf16> to vector<64x64xbf16>
    %52 = arith.truncf %49 : vector<64x256xf32> to vector<64x256xbf16>
    %cst_30 = arith.constant dense<0.000000e+00> : vector<64x256xf32>
    %53 = tpu.matmul %51, %52, %cst_30 {dimension_numbers = #tpu.dot_dimension_numbers<[1], [0], [0], [1], [0, 0, 1, 1], [], []>} : vector<64x64xbf16>, vector<64x256xbf16>, vector<64x256xf32> -> vector<64x256xf32>
    %cst_31 = arith.constant 0.000000e+00 : f32
    %54 = vector.broadcast %cst_31 : f32 to vector<64x256xf32>
    %55 = arith.cmpf ogt, %53, %54 : vector<64x256xf32>
    %cst_32 = arith.constant 0.00999999977 : f32
    %56 = vector.broadcast %cst_32 : f32 to vector<64x256xf32>
    %57 = arith.mulf %56, %53 : vector<64x256xf32>
    %58 = arith.select %55, %53, %57 : vector<64x256xi1>, vector<64x256xf32>
    %c5 = arith.constant 5 : index
    %c0_33 = arith.constant 0 : index
    %c0_34 = arith.constant 0 : index
    %59 = vector.load %arg4[%c5, %c0_33, %c0_34] : memref<9x64x64xbf16, #tpu.memory_space<vmem>>, vector<1x64x64xbf16>
    %60 = vector.shape_cast %59 : vector<1x64x64xbf16> to vector<64x64xbf16>
    %61 = arith.truncf %58 : vector<64x256xf32> to vector<64x256xbf16>
    %cst_35 = arith.constant dense<0.000000e+00> : vector<64x256xf32>
    %62 = tpu.matmul %60, %61, %cst_35 {dimension_numbers = #tpu.dot_dimension_numbers<[1], [0], [0], [1], [0, 0, 1, 1], [], []>} : vector<64x64xbf16>, vector<64x256xbf16>, vector<64x256xf32> -> vector<64x256xf32>
    %cst_36 = arith.constant 0.000000e+00 : f32
    %63 = vector.broadcast %cst_36 : f32 to vector<64x256xf32>
    %64 = arith.cmpf ogt, %62, %63 : vector<64x256xf32>
    %cst_37 = arith.constant 0.00999999977 : f32
    %65 = vector.broadcast %cst_37 : f32 to vector<64x256xf32>
    %66 = arith.mulf %65, %62 : vector<64x256xf32>
    %67 = arith.select %64, %62, %66 : vector<64x256xi1>, vector<64x256xf32>
    %c6 = arith.constant 6 : index
    %c0_38 = arith.constant 0 : index
    %c0_39 = arith.constant 0 : index
    %68 = vector.load %arg4[%c6, %c0_38, %c0_39] : memref<9x64x64xbf16, #tpu.memory_space<vmem>>, vector<1x64x64xbf16>
    %69 = vector.shape_cast %68 : vector<1x64x64xbf16> to vector<64x64xbf16>
    %70 = arith.truncf %67 : vector<64x256xf32> to vector<64x256xbf16>
    %cst_40 = arith.constant dense<0.000000e+00> : vector<64x256xf32>
    %71 = tpu.matmul %69, %70, %cst_40 {dimension_numbers = #tpu.dot_dimension_numbers<[1], [0], [0], [1], [0, 0, 1, 1], [], []>} : vector<64x64xbf16>, vector<64x256xbf16>, vector<64x256xf32> -> vector<64x256xf32>
    %cst_41 = arith.constant 0.000000e+00 : f32
    %72 = vector.broadcast %cst_41 : f32 to vector<64x256xf32>
    %73 = arith.cmpf ogt, %71, %72 : vector<64x256xf32>
    %cst_42 = arith.constant 0.00999999977 : f32
    %74 = vector.broadcast %cst_42 : f32 to vector<64x256xf32>
    %75 = arith.mulf %74, %71 : vector<64x256xf32>
    %76 = arith.select %73, %71, %75 : vector<64x256xi1>, vector<64x256xf32>
    %c7 = arith.constant 7 : index
    %c0_43 = arith.constant 0 : index
    %c0_44 = arith.constant 0 : index
    %77 = vector.load %arg4[%c7, %c0_43, %c0_44] : memref<9x64x64xbf16, #tpu.memory_space<vmem>>, vector<1x64x64xbf16>
    %78 = vector.shape_cast %77 : vector<1x64x64xbf16> to vector<64x64xbf16>
    %79 = arith.truncf %76 : vector<64x256xf32> to vector<64x256xbf16>
    %cst_45 = arith.constant dense<0.000000e+00> : vector<64x256xf32>
    %80 = tpu.matmul %78, %79, %cst_45 {dimension_numbers = #tpu.dot_dimension_numbers<[1], [0], [0], [1], [0, 0, 1, 1], [], []>} : vector<64x64xbf16>, vector<64x256xbf16>, vector<64x256xf32> -> vector<64x256xf32>
    %cst_46 = arith.constant 0.000000e+00 : f32
    %81 = vector.broadcast %cst_46 : f32 to vector<64x256xf32>
    %82 = arith.cmpf ogt, %80, %81 : vector<64x256xf32>
    %cst_47 = arith.constant 0.00999999977 : f32
    %83 = vector.broadcast %cst_47 : f32 to vector<64x256xf32>
    %84 = arith.mulf %83, %80 : vector<64x256xf32>
    %85 = arith.select %82, %80, %84 : vector<64x256xi1>, vector<64x256xf32>
    %c8 = arith.constant 8 : index
    %c0_48 = arith.constant 0 : index
    %c0_49 = arith.constant 0 : index
    %86 = vector.load %arg4[%c8, %c0_48, %c0_49] : memref<9x64x64xbf16, #tpu.memory_space<vmem>>, vector<1x64x64xbf16>
    %87 = vector.shape_cast %86 : vector<1x64x64xbf16> to vector<64x64xbf16>
    %88 = arith.truncf %85 : vector<64x256xf32> to vector<64x256xbf16>
    %cst_50 = arith.constant dense<0.000000e+00> : vector<64x256xf32>
    %89 = tpu.matmul %87, %88, %cst_50 {dimension_numbers = #tpu.dot_dimension_numbers<[1], [0], [0], [1], [0, 0, 1, 1], [], []>} : vector<64x64xbf16>, vector<64x256xbf16>, vector<64x256xf32> -> vector<64x256xf32>
    %90 = vector.extract_strided_slice %89 {offsets = [0, 0], sizes = [1, 256], strides = [1, 1]} : vector<64x256xf32> to vector<1x256xf32>
    %c0_51 = arith.constant 0 : index
    %c0_52 = arith.constant 0 : index
    %c0_53 = arith.constant 0 : index
    %91 = vector.load %arg5[%c0_51, %c0_52, %c0_53] : memref<1x1x256xf32, #tpu.memory_space<vmem>>, vector<1x1x256xf32>
    %92 = vector.shape_cast %91 : vector<1x1x256xf32> to vector<1x256xf32>
    %93 = vector.shape_cast %90 : vector<1x256xf32> to vector<1x1x256xf32>
    tpu.vector_store %arg5[%c0_51, %c0_52, %c0_53], %93 {strides = array<i32>} : memref<1x1x256xf32, #tpu.memory_space<vmem>>, vector<1x1x256xf32>,
    return
  }
  func.func @transform_0(%arg0: i32) -> (i32, i32, i32) {
    %c0_i32 = arith.constant 0 : i32
    %c0_i32_0 = arith.constant 0 : i32
    %c0_i32_1 = arith.constant 0 : i32
    return %arg0, %c0_i32, %c0_i32_0 : i32, i32, i32
  }
  func.func @transform_1(%arg0: i32) -> (i32, i32) {
    %c0_i32 = arith.constant 0 : i32
    %c0_i32_0 = arith.constant 0 : i32
    %c0_i32_1 = arith.constant 0 : i32
    return %c0_i32, %c0_i32_0 : i32, i32
  }
  func.func @transform_2(%arg0: i32) -> (i32, i32) {
    %c0_i32 = arith.constant 0 : i32
    %c0_i32_0 = arith.constant 0 : i32
    %c0_i32_1 = arith.constant 0 : i32
    return %c0_i32, %c0_i32_0 : i32, i32
  }
  func.func @transform_3(%arg0: i32) -> (i32, i32, i32) {
    %c0_i32 = arith.constant 0 : i32
    %c0_i32_0 = arith.constant 0 : i32
    %c0_i32_1 = arith.constant 0 : i32
    %c0_i32_2 = arith.constant 0 : i32
    return %c0_i32, %c0_i32_0, %c0_i32_1 : i32, i32, i32
  }
  func.func @transform_4(%arg0: i32) -> (i32, i32, i32) {
    %c0_i32 = arith.constant 0 : i32
    %c0_i32_0 = arith.constant 0 : i32
    %c0_i32_1 = arith.constant 0 : i32
    return %arg0, %c0_i32, %c0_i32_0 : i32, i32, i32
  }
}

</mosaic_0001>

<llo_original>
// kernel: tpu_custom_call.1
$region0: #{tpu_custom_call.1}
  #allocation0 [shape = 'u32[]', space=smem, size = 0x4, offset = 0x4, fixed_abs, tag = 'smem constant byte address 0x4 - core index']
  #allocation1 [shape = 'u32[144,128]{1,0:T(1,128)}', space=vmem, size = 0x12000, scoped, tag = 'internal scratch']
  %s0 = inlined_call_operand.vmem [shape: f32[1,1,256], index: 0, kind: input, shape index: {}]
  %s1 = inlined_call_operand.vmem [shape: f32[64,1], index: 1, kind: input, shape index: {}]
  %s2 = inlined_call_operand.vmem [shape: f32[64,1], index: 2, kind: input, shape index: {}]
  %s3 = inlined_call_operand.hbm [shape: bf16[9,64,64], index: 3, kind: input, shape index: {}]
  %s4 = inlined_call_operand.hbm [shape: f32[1,1,256], index: 4, kind: output, shape index: {}]
  %s5 = sld [smem:[#allocation0]]
  $region30: #{tpu_custom_call.1} parent=0
    _
  %s7 = ssub.s32 1, %s5
  %s8 = scalar_select 0, %s7, %s5
  $region1: #{tpu_custom_call.1} parent=0
    #allocation2 [shape = 'u8[147456]{0}', space=vmem, size = 0x24000, scoped, tag = 'input window, operand 3, single buffered']
    #allocation3 [shape = 's32[1]{0}', space=sflag, size = 0x4, scoped, tag = 'scoped memory for tpu_custom_call.1']
    #allocation4 [shape = 's32[1]{0}', space=sflag, size = 0x4, scoped, tag = 'scoped memory for tpu_custom_call.1']
    #allocation5 [shape = 'u8[1024]{0}', space=vmem, size = 0x400, scoped, tag = 'output window, operand 0, single buffered']
    %9 = vsyncpa [#allocation3], 0
    %10 = vsyncpa [#allocation4], 0
    // Predicated region
    $region2: #{tpu_custom_call.1} parent=1 // pred_check
      _
    $region3: #{tpu_custom_call.1} parent=1 // pred_check_branch
      %12 = sbr.rel (0) target = $region5
    $region4: #{tpu_custom_call.1} parent=1 // pred_region
      _
    $region5: #{tpu_custom_call.1} parent=1 // pred_fallthru
      _
    // Predicated region
    $region6: #{tpu_custom_call.1} parent=1 // pred_check
      _
    $region7: #{tpu_custom_call.1} parent=1 // pred_check_branch
      %14 = sbr.rel (0) target = $region9
    $region8: #{tpu_custom_call.1} parent=1 // pred_region
      _
    $region9: #{tpu_custom_call.1} parent=1 // pred_fallthru
      _
    // Predicated region
    $region10: #{tpu_custom_call.1} parent=1 // pred_check
      _
    $region11: #{tpu_custom_call.1} parent=1 // pred_check_branch
      %16 = sbr.rel (0) target = $region13
    $region12: #{tpu_custom_call.1} parent=1 // pred_region
      _
    $region13: #{tpu_custom_call.1} parent=1 // pred_fallthru
      _
    // Predicated region
    $region14: #{tpu_custom_call.1} parent=1 // pred_check
      _
    $region15: #{tpu_custom_call.1} parent=1 // pred_check_branch
      %18 = sbr.rel (0) target = $region17
    $region16: #{tpu_custom_call.1} parent=1 // pred_region
      %s20 = ssub.s32 4608, 4608
      %21 = vsyncadd [#allocation3], %s20
      %s22 = sshll.u32 [#allocation2], 4
      %s23 = int_to_ptr.vmem [resolvable:$true] %s22
      %28 = dma.hbm_to_vmem [thread:$0]  %s3, 4608, %s23, [#allocation3], 64, 64, 4
    $region17: #{tpu_custom_call.1} parent=1 // pred_fallthru
      _
    // Predicated region
    $region18: #{tpu_custom_call.1} parent=1 // pred_check
      _
    $region19: #{tpu_custom_call.1} parent=1 // pred_check_branch
      %30 = sbr.rel (0) target = $region21
    $region20: #{tpu_custom_call.1} parent=1 // pred_region
      %31 = dma.done [#allocation3], 4608
    $region21: #{tpu_custom_call.1} parent=1 // pred_fallthru
      _
    %v33 = vld [vmem:[%s0] sm:$0x3]
    %v34 = vld [vmem:[%s1] sm:$0xff]
    %v35 = vld [vmem:[%s1 + $0x8] sm:$0xff]
    %v36 = vld [vmem:[%s1 + $0x10] sm:$0xff]
    %v37 = vld [vmem:[%s1 + $0x18] sm:$0xff]
    %v38 = vld [vmem:[%s1 + $0x20] sm:$0xff]
    %v39 = vld [vmem:[%s1 + $0x28] sm:$0xff]
    %v40 = vld [vmem:[%s1 + $0x30] sm:$0xff]
    %v41 = vld [vmem:[%s1 + $0x38] sm:$0xff]
    %43 = vset.pattern.permute.xlu0 0
    %44 = vperm.xlu0 %43, %v34
    %v45 = vpop.permute.xlu0 %44
    %48 = vset.pattern.permute.xlu0 0
    %49 = vperm.xlu0 %48, %v35
    %v50 = vpop.permute.xlu0 %49
    %53 = vset.pattern.permute.xlu0 0
    %54 = vperm.xlu0 %53, %v36
    %v55 = vpop.permute.xlu0 %54
    %58 = vset.pattern.permute.xlu0 0
    %59 = vperm.xlu0 %58, %v37
    %v60 = vpop.permute.xlu0 %59
    %63 = vset.pattern.permute.xlu0 0
    %64 = vperm.xlu0 %63, %v38
    %v65 = vpop.permute.xlu0 %64
    %68 = vset.pattern.permute.xlu0 0
    %69 = vperm.xlu0 %68, %v39
    %v70 = vpop.permute.xlu0 %69
    %73 = vset.pattern.permute.xlu0 0
    %74 = vperm.xlu0 %73, %v40
    %v75 = vpop.permute.xlu0 %74
    %78 = vset.pattern.permute.xlu0 0
    %79 = vperm.xlu0 %78, %v41
    %v80 = vpop.permute.xlu0 %79
    %v83 = vlaneseq
    %v84 = vshrl.u32 %v83, 7
    %v85 = vsub.s32 0, %v84
    %v86 = vrot.slane %v33, %v85
    %v87 = vlaneseq
    %v88 = vshrl.u32 %v87, 7
    %v89 = vsub.s32 1, %v88
    %v90 = vrot.slane %v33, %v89
    %v93 = vmul.f32 %v45, %v86
    %v94 = vmul.f32 %v45, %v90
    %v95 = vmul.f32 %v50, %v86
    %v96 = vmul.f32 %v50, %v90
    %v97 = vmul.f32 %v55, %v86
    %v98 = vmul.f32 %v55, %v90
    %v99 = vmul.f32 %v60, %v86
    %v100 = vmul.f32 %v60, %v90
    %v101 = vmul.f32 %v65, %v86
    %v102 = vmul.f32 %v65, %v90
    %v103 = vmul.f32 %v70, %v86
    %v104 = vmul.f32 %v70, %v90
    %v105 = vmul.f32 %v75, %v86
    %v106 = vmul.f32 %v75, %v90
    %v107 = vmul.f32 %v80, %v86
    %v108 = vmul.f32 %v80, %v90
    %v109 = vld [vmem:[%s2] sm:$0xff]
    %v110 = vld [vmem:[%s2 + $0x8] sm:$0xff]
    %v111 = vld [vmem:[%s2 + $0x10] sm:$0xff]
    %v112 = vld [vmem:[%s2 + $0x18] sm:$0xff]
    %v113 = vld [vmem:[%s2 + $0x20] sm:$0xff]
    %v114 = vld [vmem:[%s2 + $0x28] sm:$0xff]
    %v115 = vld [vmem:[%s2 + $0x30] sm:$0xff]
    %v116 = vld [vmem:[%s2 + $0x38] sm:$0xff]
    %118 = vset.pattern.permute.xlu0 0
    %119 = vperm.xlu0 %118, %v109
    %v120 = vpop.permute.xlu0 %119
    %123 = vset.pattern.permute.xlu0 0
    %124 = vperm.xlu0 %123, %v110
    %v125 = vpop.permute.xlu0 %124
    %128 = vset.pattern.permute.xlu0 0
    %129 = vperm.xlu0 %128, %v111
    %v130 = vpop.permute.xlu0 %129
    %133 = vset.pattern.permute.xlu0 0
    %134 = vperm.xlu0 %133, %v112
    %v135 = vpop.permute.xlu0 %134
    %138 = vset.pattern.permute.xlu0 0
    %139 = vperm.xlu0 %138, %v113
    %v140 = vpop.permute.xlu0 %139
    %143 = vset.pattern.permute.xlu0 0
    %144 = vperm.xlu0 %143, %v114
    %v145 = vpop.permute.xlu0 %144
    %148 = vset.pattern.permute.xlu0 0
    %149 = vperm.xlu0 %148, %v115
    %v150 = vpop.permute.xlu0 %149
    %153 = vset.pattern.permute.xlu0 0
    %154 = vperm.xlu0 %153, %v116
    %v155 = vpop.permute.xlu0 %154
    %v157 = vadd.f32 %v93, %v120
    %v158 = vadd.f32 %v94, %v120
    %v159 = vadd.f32 %v95, %v125
    %v160 = vadd.f32 %v96, %v125
    %v161 = vadd.f32 %v97, %v130
    %v162 = vadd.f32 %v98, %v130
    %v163 = vadd.f32 %v99, %v135
    %v164 = vadd.f32 %v100, %v135
    %v165 = vadd.f32 %v101, %v140
    %v166 = vadd.f32 %v102, %v140
    %v167 = vadd.f32 %v103, %v145
    %v168 = vadd.f32 %v104, %v145
    %v169 = vadd.f32 %v105, %v150
    %v170 = vadd.f32 %v106, %v150
    %v171 = vadd.f32 %v107, %v155
    %v172 = vadd.f32 %v108, %v155
    %vm173 = vcmp.gt.f32.partialorder %v157, 0.0
    %vm174 = vcmp.gt.f32.partialorder %v158, 0.0
    %vm175 = vcmp.gt.f32.partialorder %v159, 0.0
    %vm176 = vcmp.gt.f32.partialorder %v160, 0.0
    %vm177 = vcmp.gt.f32.partialorder %v161, 0.0
    %vm178 = vcmp.gt.f32.partialorder %v162, 0.0
    %vm179 = vcmp.gt.f32.partialorder %v163, 0.0
    %vm180 = vcmp.gt.f32.partialorder %v164, 0.0
    %vm181 = vcmp.gt.f32.partialorder %v165, 0.0
    %vm182 = vcmp.gt.f32.partialorder %v166, 0.0
    %vm183 = vcmp.gt.f32.partialorder %v167, 0.0
    %vm184 = vcmp.gt.f32.partialorder %v168, 0.0
    %vm185 = vcmp.gt.f32.partialorder %v169, 0.0
    %vm186 = vcmp.gt.f32.partialorder %v170, 0.0
    %vm187 = vcmp.gt.f32.partialorder %v171, 0.0
    %vm188 = vcmp.gt.f32.partialorder %v172, 0.0
    %v189 = vmul.f32 %v157, 0.01
    %v190 = vmul.f32 %v158, 0.01
    %v191 = vmul.f32 %v159, 0.01
    %v192 = vmul.f32 %v160, 0.01
    %v193 = vmul.f32 %v161, 0.01
    %v194 = vmul.f32 %v162, 0.01
    %v195 = vmul.f32 %v163, 0.01
    %v196 = vmul.f32 %v164, 0.01
    %v197 = vmul.f32 %v165, 0.01
    %v198 = vmul.f32 %v166, 0.01
    %v199 = vmul.f32 %v167, 0.01
    %v200 = vmul.f32 %v168, 0.01
    %v201 = vmul.f32 %v169, 0.01
    %v202 = vmul.f32 %v170, 0.01
    %v203 = vmul.f32 %v171, 0.01
    %v204 = vmul.f32 %v172, 0.01
    %v205 = vsel %vm173, %v157, %v189
    %v206 = vsel %vm174, %v158, %v190
    %v207 = vsel %vm175, %v159, %v191
    %v208 = vsel %vm176, %v160, %v192
    %v209 = vsel %vm177, %v161, %v193
    %v210 = vsel %vm178, %v162, %v194
    %v211 = vsel %vm179, %v163, %v195
    %v212 = vsel %vm180, %v164, %v196
    %v213 = vsel %vm181, %v165, %v197
    %v214 = vsel %vm182, %v166, %v198
    %v215 = vsel %vm183, %v167, %v199
    %v216 = vsel %vm184, %v168, %v200
    %v217 = vsel %vm185, %v169, %v201
    %v218 = vsel %vm186, %v170, %v202
    %v219 = vsel %vm187, %v171, %v203
    %v220 = vsel %vm188, %v172, %v204
    %v221 = vld [vmem:[#allocation2] sm:$0xf]
    %v222 = vld [vmem:[#allocation2 + $0x4] sm:$0xf]
    %v223 = vld [vmem:[#allocation2 + $0x8] sm:$0xf]
    %v224 = vld [vmem:[#allocation2 + $0xc] sm:$0xf]
    %v225 = vld [vmem:[#allocation2 + $0x10] sm:$0xf]
    %v226 = vld [vmem:[#allocation2 + $0x14] sm:$0xf]
    %v227 = vld [vmem:[#allocation2 + $0x18] sm:$0xf]
    %v228 = vld [vmem:[#allocation2 + $0x1c] sm:$0xf]
    %v229 = vpack.c.bf16 %v207, %v205
    %v230 = vpack.c.bf16 %v208, %v206
    %v231 = vpack.c.bf16 %v211, %v209
    %v232 = vpack.c.bf16 %v212, %v210
    %v233 = vpack.c.bf16 %v215, %v213
    %v234 = vpack.c.bf16 %v216, %v214
    %v235 = vpack.c.bf16 %v219, %v217
    %v236 = vpack.c.bf16 %v220, %v218
    %v245 = vunpack.c.l.b16 %v221
    %v246 = vunpack.c.l.b16 %v222
    %v247 = vunpack.c.l.b16 %v223
    %v248 = vunpack.c.l.b16 %v224
    %v249 = vunpack.c.l.b16 %v225
    %v250 = vunpack.c.l.b16 %v226
    %v251 = vunpack.c.l.b16 %v227
    %v252 = vunpack.c.l.b16 %v228
    %v253 = vpack.c.b16 %v246, %v245
    %v254 = vpack.c.b16 %v248, %v247
    %v255 = vpack.c.b16 %v250, %v249
    %v256 = vpack.c.b16 %v252, %v251
    %vm257 = vcmask 523264
    %v259 = vsel %vm257, %v253, 0
    %v262 = vsel %vm257, %v254, 0
    %v265 = vsel %vm257, %v255, 0
    %v268 = vsel %vm257, %v256, 0
    %270 = vmatprep.subr.bf16.mxu0 %v230
    %271 = vmatpush1.bf16.msra.mxu0 %v229
    %272 = vmatprep.subr.bf16.mxu0 %v232
    %273 = vmatpush1.bf16.msra.mxu0 %v231
    %274 = vmatprep.subr.bf16.mxu0 %v234
    %275 = vmatpush1.bf16.msra.mxu0 %v233
    %276 = vmatprep.subr.bf16.mxu0 %v236
    %277 = vmatpush1.bf16.msra.mxu0 %v235
    %278 = vmatprep.subr.bf16.mxu0 0
    %279 = vmatpush1.bf16.msra.mxu0 0
    %280 = vmatprep.subr.bf16.mxu0 0
    %281 = vmatpush1.bf16.msra.mxu0 0
    %282 = vmatprep.subr.bf16.mxu0 0
    %283 = vmatpush1.bf16.msra.mxu0 0
    %284 = vmatprep.subr.bf16.mxu0 0
    %285 = vmatpush1.bf16.msra.mxu0 0
    %286 = vmatprep.subr.bf16.mxu0 0
    %287 = vmatpush1.bf16.msra.mxu0 0
    %288 = vmatprep.subr.bf16.mxu0 0
    %289 = vmatpush1.bf16.msra.mxu0 0
    %290 = vmatprep.subr.bf16.mxu0 0
    %291 = vmatpush1.bf16.msra.mxu0 0
    %292 = vmatprep.subr.bf16.mxu0 0
    %293 = vmatpush1.bf16.msra.mxu0 0
    %294 = vmatprep.subr.bf16.mxu0 0
    %295 = vmatpush1.bf16.msra.mxu0 0
    %296 = vmatprep.subr.bf16.mxu0 0
    %297 = vmatpush1.bf16.msra.mxu0 0
    %298 = vmatprep.subr.bf16.mxu0 0
    %299 = vmatpush1.bf16.msra.mxu0 0
    %300 = vmatprep.subr.bf16.mxu0 0
    %301 = vmatpush1.bf16.msra.mxu0 0
    %302 = vmatprep.mubr.bf16.mxu0 0
    %303 = vmatmul.mubr.bf16.gmra.mrb[0].mxu0 %v259
    %v304 = vpop.f32.mrb[0].mxu0
    %v305 = vadd.f32 0.0, %v304
    %v306 = vpop.f32.mrb[0].mxu0
    %v307 = vadd.f32 0.0, %v306
    %v308 = vpop.f32.mrb[0].mxu0
    %v309 = vadd.f32 0.0, %v308
    %v310 = vpop.f32.mrb[0].mxu0
    %v311 = vadd.f32 0.0, %v310
    %312 = vmatprep.mubr.bf16.mxu0 0
    %313 = vmatmul.mubr.bf16.gmra.mrb[0].mxu0 %v262
    %v314 = vpop.f32.mrb[0].mxu0
    %v315 = vadd.f32 0.0, %v314
    %v316 = vpop.f32.mrb[0].mxu0
    %v317 = vadd.f32 0.0, %v316
    %v318 = vpop.f32.mrb[0].mxu0
    %v319 = vadd.f32 0.0, %v318
    %v320 = vpop.f32.mrb[0].mxu0
    %v321 = vadd.f32 0.0, %v320
    %322 = vmatprep.mubr.bf16.mxu0 0
    %323 = vmatmul.mubr.bf16.gmra.mrb[0].mxu0 %v265
    %v324 = vpop.f32.mrb[0].mxu0
    %v325 = vadd.f32 0.0, %v324
    %v326 = vpop.f32.mrb[0].mxu0
    %v327 = vadd.f32 0.0, %v326
    %v328 = vpop.f32.mrb[0].mxu0
    %v329 = vadd.f32 0.0, %v328
    %v330 = vpop.f32.mrb[0].mxu0
    %v331 = vadd.f32 0.0, %v330
    %332 = vmatprep.mubr.bf16.mxu0 0
    %333 = vmatmul.mubr.bf16.gmra.mrb[0].mxu0 %v268
    %v334 = vpop.f32.mrb[0].mxu0
    %v335 = vadd.f32 0.0, %v334
    %v336 = vpop.f32.mrb[0].mxu0
    %v337 = vadd.f32 0.0, %v336
    %v338 = vpop.f32.mrb[0].mxu0
    %v339 = vadd.f32 0.0, %v338
    %v340 = vpop.f32.mrb[0].mxu0
    %v341 = vadd.f32 0.0, %v340
    %342 = vdwg.mxu0
    %vm343 = vcmp.gt.f32.partialorder %v305, 0.0
    %vm344 = vcmp.gt.f32.partialorder %v307, 0.0
    %vm345 = vcmp.gt.f32.partialorder %v309, 0.0
    %vm346 = vcmp.gt.f32.partialorder %v311, 0.0
    %vm347 = vcmp.gt.f32.partialorder %v315, 0.0
    %vm348 = vcmp.gt.f32.partialorder %v317, 0.0
    %vm349 = vcmp.gt.f32.partialorder %v319, 0.0
    %vm350 = vcmp.gt.f32.partialorder %v321, 0.0
    %vm351 = vcmp.gt.f32.partialorder %v325, 0.0
    %vm352 = vcmp.gt.f32.partialorder %v327, 0.0
    %vm353 = vcmp.gt.f32.partialorder %v329, 0.0
    %vm354 = vcmp.gt.f32.partialorder %v331, 0.0
    %vm355 = vcmp.gt.f32.partialorder %v335, 0.0
    %vm356 = vcmp.gt.f32.partialorder %v337, 0.0
    %vm357 = vcmp.gt.f32.partialorder %v339, 0.0
    %vm358 = vcmp.gt.f32.partialorder %v341, 0.0
    %v359 = vmul.f32 %v305, 0.01
    %v360 = vmul.f32 %v307, 0.01
    %v361 = vmul.f32 %v309, 0.01
    %v362 = vmul.f32 %v311, 0.01
    %v363 = vmul.f32 %v315, 0.01
    %v364 = vmul.f32 %v317, 0.01
    %v365 = vmul.f32 %v319, 0.01
    %v366 = vmul.f32 %v321, 0.01
    %v367 = vmul.f32 %v325, 0.01
    %v368 = vmul.f32 %v327, 0.01
    %v369 = vmul.f32 %v329, 0.01
    %v370 = vmul.f32 %v331, 0.01
    %v371 = vmul.f32 %v335, 0.01
    %v372 = vmul.f32 %v337, 0.01
    %v373 = vmul.f32 %v339, 0.01
    %v374 = vmul.f32 %v341, 0.01
    %v375 = vsel %vm343, %v305, %v359
    %v376 = vsel %vm344, %v307, %v360
    %v377 = vsel %vm345, %v309, %v361
    %v378 = vsel %vm346, %v311, %v362
    %v379 = vsel %vm347, %v315, %v363
    %v380 = vsel %vm348, %v317, %v364
    %v381 = vsel %vm349, %v319, %v365
    %v382 = vsel %vm350, %v321, %v366
    %v383 = vsel %vm351, %v325, %v367
    %v384 = vsel %vm352, %v327, %v368
    %v385 = vsel %vm353, %v329, %v369
    %v386 = vsel %vm354, %v331, %v370
    %v387 = vsel %vm355, %v335, %v371
    %v388 = vsel %vm356, %v337, %v372
    %v389 = vsel %vm357, %v339, %v373
    %v390 = vsel %vm358, %v341, %v374
    %s391 = scalar_lea.vmem [#allocation2], 32
    %v392 = vld [vmem:[%s391] sm:$0xf]
    %v393 = vld [vmem:[%s391 + $0x4] sm:$0xf]
    %v394 = vld [vmem:[%s391 + $0x8] sm:$0xf]
    %v395 = vld [vmem:[%s391 + $0xc] sm:$0xf]
    %v396 = vld [vmem:[%s391 + $0x10] sm:$0xf]
    %v397 = vld [vmem:[%s391 + $0x14] sm:$0xf]
    %v398 = vld [vmem:[%s391 + $0x18] sm:$0xf]
    %v399 = vld [vmem:[%s391 + $0x1c] sm:$0xf]
    %v400 = vpack.c.bf16 %v377, %v375
    %v401 = vpack.c.bf16 %v378, %v376
    %v402 = vpack.c.bf16 %v381, %v379
    %v403 = vpack.c.bf16 %v382, %v380
    %v404 = vpack.c.bf16 %v385, %v383
    %v405 = vpack.c.bf16 %v386, %v384
    %v406 = vpack.c.bf16 %v389, %v387
    %v407 = vpack.c.bf16 %v390, %v388
    %v416 = vunpack.c.l.b16 %v392
    %v417 = vunpack.c.l.b16 %v393
    %v418 = vunpack.c.l.b16 %v394
    %v419 = vunpack.c.l.b16 %v395
    %v420 = vunpack.c.l.b16 %v396
    %v421 = vunpack.c.l.b16 %v397
    %v422 = vunpack.c.l.b16 %v398
    %v423 = vunpack.c.l.b16 %v399
    %v424 = vpack.c.b16 %v417, %v416
    %v425 = vpack.c.b16 %v419, %v418
    %v426 = vpack.c.b16 %v421, %v420
    %v427 = vpack.c.b16 %v423, %v422
    %v429 = vsel %vm257, %v424, 0
    %v432 = vsel %vm257, %v425, 0
    %v435 = vsel %vm257, %v426, 0
    %v438 = vsel %vm257, %v427, 0
    %440 = vmatprep.subr.bf16.mxu0 %v401
    %441 = vmatpush1.bf16.msra.mxu0 %v400
    %442 = vmatprep.subr.bf16.mxu0 %v403
    %443 = vmatpush1.bf16.msra.mxu0 %v402
    %444 = vmatprep.subr.bf16.mxu0 %v405
    %445 = vmatpush1.bf16.msra.mxu0 %v404
    %446 = vmatprep.subr.bf16.mxu0 %v407
    %447 = vmatpush1.bf16.msra.mxu0 %v406
    %448 = vmatprep.subr.bf16.mxu0 0
    %449 = vmatpush1.bf16.msra.mxu0 0
    %450 = vmatprep.subr.bf16.mxu0 0
    %451 = vmatpush1.bf16.msra.mxu0 0
    %452 = vmatprep.subr.bf16.mxu0 0
    %453 = vmatpush1.bf16.msra.mxu0 0
    %454 = vmatprep.subr.bf16.mxu0 0
    %455 = vmatpush1.bf16.msra.mxu0 0
    %456 = vmatprep.subr.bf16.mxu0 0
    %457 = vmatpush1.bf16.msra.mxu0 0
    %458 = vmatprep.subr.bf16.mxu0 0
    %459 = vmatpush1.bf16.msra.mxu0 0
    %460 = vmatprep.subr.bf16.mxu0 0
    %461 = vmatpush1.bf16.msra.mxu0 0
    %462 = vmatprep.subr.bf16.mxu0 0
    %463 = vmatpush1.bf16.msra.mxu0 0
    %464 = vmatprep.subr.bf16.mxu0 0
    %465 = vmatpush1.bf16.msra.mxu0 0
    %466 = vmatprep.subr.bf16.mxu0 0
    %467 = vmatpush1.bf16.msra.mxu0 0
    %468 = vmatprep.subr.bf16.mxu0 0
    %469 = vmatpush1.bf16.msra.mxu0 0
    %470 = vmatprep.subr.bf16.mxu0 0
    %471 = vmatpush1.bf16.msra.mxu0 0
    %472 = vmatprep.mubr.bf16.mxu0 0
    %473 = vmatmul.mubr.bf16.gmra.mrb[0].mxu0 %v429
    %v474 = vpop.f32.mrb[0].mxu0
    %v475 = vadd.f32 0.0, %v474
    %v476 = vpop.f32.mrb[0].mxu0
    %v477 = vadd.f32 0.0, %v476
    %v478 = vpop.f32.mrb[0].mxu0
    %v479 = vadd.f32 0.0, %v478
    %v480 = vpop.f32.mrb[0].mxu0
    %v481 = vadd.f32 0.0, %v480
    %482 = vmatprep.mubr.bf16.mxu0 0
    %483 = vmatmul.mubr.bf16.gmra.mrb[0].mxu0 %v432
    %v484 = vpop.f32.mrb[0].mxu0
    %v485 = vadd.f32 0.0, %v484
    %v486 = vpop.f32.mrb[0].mxu0
    %v487 = vadd.f32 0.0, %v486
    %v488 = vpop.f32.mrb[0].mxu0
    %v489 = vadd.f32 0.0, %v488
    %v490 = vpop.f32.mrb[0].mxu0
    %v491 = vadd.f32 0.0, %v490
    %492 = vmatprep.mubr.bf16.mxu0 0
    %493 = vmatmul.mubr.bf16.gmra.mrb[0].mxu0 %v435
    %v494 = vpop.f32.mrb[0].mxu0
    %v495 = vadd.f32 0.0, %v494
    %v496 = vpop.f32.mrb[0].mxu0
    %v497 = vadd.f32 0.0, %v496
    %v498 = vpop.f32.mrb[0].mxu0
    %v499 = vadd.f32 0.0, %v498
    %v500 = vpop.f32.mrb[0].mxu0
    %v501 = vadd.f32 0.0, %v500
    %502 = vmatprep.mubr.bf16.mxu0 0
    %503 = vmatmul.mubr.bf16.gmra.mrb[0].mxu0 %v438
    %v504 = vpop.f32.mrb[0].mxu0
    %v505 = vadd.f32 0.0, %v504
    %v506 = vpop.f32.mrb[0].mxu0
    %v507 = vadd.f32 0.0, %v506
    %v508 = vpop.f32.mrb[0].mxu0
    %v509 = vadd.f32 0.0, %v508
    %v510 = vpop.f32.mrb[0].mxu0
    %v511 = vadd.f32 0.0, %v510
    %512 = vdwg.mxu0
    %vm513 = vcmp.gt.f32.partialorder %v475, 0.0
    %vm514 = vcmp.gt.f32.partialorder %v477, 0.0
    %vm515 = vcmp.gt.f32.partialorder %v479, 0.0
    %vm516 = vcmp.gt.f32.partialorder %v481, 0.0
    %vm517 = vcmp.gt.f32.partialorder %v485, 0.0
    %vm518 = vcmp.gt.f32.partialorder %v487, 0.0
    %vm519 = vcmp.gt.f32.partialorder %v489, 0.0
    %vm520 = vcmp.gt.f32.partialorder %v491, 0.0
    %vm521 = vcmp.gt.f32.partialorder %v495, 0.0
    %vm522 = vcmp.gt.f32.partialorder %v497, 0.0
    %vm523 = vcmp.gt.f32.partialorder %v499, 0.0
    %vm524 = vcmp.gt.f32.partialorder %v501, 0.0
    %vm525 = vcmp.gt.f32.partialorder %v505, 0.0
    %vm526 = vcmp.gt.f32.partialorder %v507, 0.0
    %vm527 = vcmp.gt.f32.partialorder %v509, 0.0
    %vm528 = vcmp.gt.f32.partialorder %v511, 0.0
    %v529 = vmul.f32 %v475, 0.01
    %v530 = vmul.f32 %v477, 0.01
    %v531 = vmul.f32 %v479, 0.01
    %v532 = vmul.f32 %v481, 0.01
    %v533 = vmul.f32 %v485, 0.01
    %v534 = vmul.f32 %v487, 0.01
    %v535 = vmul.f32 %v489, 0.01
    %v536 = vmul.f32 %v491, 0.01
    %v537 = vmul.f32 %v495, 0.01
    %v538 = vmul.f32 %v497, 0.01
    %v539 = vmul.f32 %v499, 0.01
    %v540 = vmul.f32 %v501, 0.01
    %v541 = vmul.f32 %v505, 0.01
    %v542 = vmul.f32 %v507, 0.01
    %v543 = vmul.f32 %v509, 0.01
    %v544 = vmul.f32 %v511, 0.01
    %v545 = vsel %vm513, %v475, %v529
    %v546 = vsel %vm514, %v477, %v530
    %v547 = vsel %vm515, %v479, %v531
    %v548 = vsel %vm516, %v481, %v532
    %v549 = vsel %vm517, %v485, %v533
    %v550 = vsel %vm518, %v487, %v534
    %v551 = vsel %vm519, %v489, %v535
    %v552 = vsel %vm520, %v491, %v536
    %v553 = vsel %vm521, %v495, %v537
    %v554 = vsel %vm522, %v497, %v538
    %v555 = vsel %vm523, %v499, %v539
    %v556 = vsel %vm524, %v501, %v540
    %v557 = vsel %vm525, %v505, %v541
    %v558 = vsel %vm526, %v507, %v542
    %v559 = vsel %vm527, %v509, %v543
    %v560 = vsel %vm528, %v511, %v544
    %s561 = scalar_lea.vmem [#allocation2], 64
    %v562 = vld [vmem:[%s561] sm:$0xf]
    %v563 = vld [vmem:[%s561 + $0x4] sm:$0xf]
    %v564 = vld [vmem:[%s561 + $0x8] sm:$0xf]
    %v565 = vld [vmem:[%s561 + $0xc] sm:$0xf]
    %v566 = vld [vmem:[%s561 + $0x10] sm:$0xf]
    %v567 = vld [vmem:[%s561 + $0x14] sm:$0xf]
    %v568 = vld [vmem:[%s561 + $0x18] sm:$0xf]
    %v569 = vld [vmem:[%s561 + $0x1c] sm:$0xf]
    %v570 = vpack.c.bf16 %v547, %v545
    %v571 = vpack.c.bf16 %v548, %v546
    %v572 = vpack.c.bf16 %v551, %v549
    %v573 = vpack.c.bf16 %v552, %v550
    %v574 = vpack.c.bf16 %v555, %v553
    %v575 = vpack.c.bf16 %v556, %v554
    %v576 = vpack.c.bf16 %v559, %v557
    %v577 = vpack.c.bf16 %v560, %v558
    %v586 = vunpack.c.l.b16 %v562
    %v587 = vunpack.c.l.b16 %v563
    %v588 = vunpack.c.l.b16 %v564
    %v589 = vunpack.c.l.b16 %v565
    %v590 = vunpack.c.l.b16 %v566
    %v591 = vunpack.c.l.b16 %v567
    %v592 = vunpack.c.l.b16 %v568
    %v593 = vunpack.c.l.b16 %v569
    %v594 = vpack.c.b16 %v587, %v586
    %v595 = vpack.c.b16 %v589, %v588
    %v596 = vpack.c.b16 %v591, %v590
    %v597 = vpack.c.b16 %v593, %v592
    %v599 = vsel %vm257, %v594, 0
    %v602 = vsel %vm257, %v595, 0
    %v605 = vsel %vm257, %v596, 0
    %v608 = vsel %vm257, %v597, 0
    %610 = vmatprep.subr.bf16.mxu0 %v571
    %611 = vmatpush1.bf16.msra.mxu0 %v570
    %612 = vmatprep.subr.bf16.mxu0 %v573
    %613 = vmatpush1.bf16.msra.mxu0 %v572
    %614 = vmatprep.subr.bf16.mxu0 %v575
    %615 = vmatpush1.bf16.msra.mxu0 %v574
    %616 = vmatprep.subr.bf16.mxu0 %v577
    %617 = vmatpush1.bf16.msra.mxu0 %v576
    %618 = vmatprep.subr.bf16.mxu0 0
    %619 = vmatpush1.bf16.msra.mxu0 0
    %620 = vmatprep.subr.bf16.mxu0 0
    %621 = vmatpush1.bf16.msra.mxu0 0
    %622 = vmatprep.subr.bf16.mxu0 0
    %623 = vmatpush1.bf16.msra.mxu0 0
    %624 = vmatprep.subr.bf16.mxu0 0
    %625 = vmatpush1.bf16.msra.mxu0 0
    %626 = vmatprep.subr.bf16.mxu0 0
    %627 = vmatpush1.bf16.msra.mxu0 0
    %628 = vmatprep.subr.bf16.mxu0 0
    %629 = vmatpush1.bf16.msra.mxu0 0
    %630 = vmatprep.subr.bf16.mxu0 0
    %631 = vmatpush1.bf16.msra.mxu0 0
    %632 = vmatprep.subr.bf16.mxu0 0
    %633 = vmatpush1.bf16.msra.mxu0 0
    %634 = vmatprep.subr.bf16.mxu0 0
    %635 = vmatpush1.bf16.msra.mxu0 0
    %636 = vmatprep.subr.bf16.mxu0 0
    %637 = vmatpush1.bf16.msra.mxu0 0
    %638 = vmatprep.subr.bf16.mxu0 0
    %639 = vmatpush1.bf16.msra.mxu0 0
    %640 = vmatprep.subr.bf16.mxu0 0
    %641 = vmatpush1.bf16.msra.mxu0 0
    %642 = vmatprep.mubr.bf16.mxu0 0
    %643 = vmatmul.mubr.bf16.gmra.mrb[0].mxu0 %v599
    %v644 = vpop.f32.mrb[0].mxu0
    %v645 = vadd.f32 0.0, %v644
    %v646 = vpop.f32.mrb[0].mxu0
    %v647 = vadd.f32 0.0, %v646
    %v648 = vpop.f32.mrb[0].mxu0
    %v649 = vadd.f32 0.0, %v648
    %v650 = vpop.f32.mrb[0].mxu0
    %v651 = vadd.f32 0.0, %v650
    %652 = vmatprep.mubr.bf16.mxu0 0
    %653 = vmatmul.mubr.bf16.gmra.mrb[0].mxu0 %v602
    %v654 = vpop.f32.mrb[0].mxu0
    %v655 = vadd.f32 0.0, %v654
    %v656 = vpop.f32.mrb[0].mxu0
    %v657 = vadd.f32 0.0, %v656
    %v658 = vpop.f32.mrb[0].mxu0
    %v659 = vadd.f32 0.0, %v658
    %v660 = vpop.f32.mrb[0].mxu0
    %v661 = vadd.f32 0.0, %v660
    %662 = vmatprep.mubr.bf16.mxu0 0
    %663 = vmatmul.mubr.bf16.gmra.mrb[0].mxu0 %v605
    %v664 = vpop.f32.mrb[0].mxu0
    %v665 = vadd.f32 0.0, %v664
    %v666 = vpop.f32.mrb[0].mxu0
    %v667 = vadd.f32 0.0, %v666
    %v668 = vpop.f32.mrb[0].mxu0
    %v669 = vadd.f32 0.0, %v668
    %v670 = vpop.f32.mrb[0].mxu0
    %v671 = vadd.f32 0.0, %v670
    %672 = vmatprep.mubr.bf16.mxu0 0
    %673 = vmatmul.mubr.bf16.gmra.mrb[0].mxu0 %v608
    %v674 = vpop.f32.mrb[0].mxu0
    %v675 = vadd.f32 0.0, %v674
    %v676 = vpop.f32.mrb[0].mxu0
    %v677 = vadd.f32 0.0, %v676
    %v678 = vpop.f32.mrb[0].mxu0
    %v679 = vadd.f32 0.0, %v678
    %v680 = vpop.f32.mrb[0].mxu0
    %v681 = vadd.f32 0.0, %v680
    %682 = vdwg.mxu0
    %vm683 = vcmp.gt.f32.partialorder %v645, 0.0
    %vm684 = vcmp.gt.f32.partialorder %v647, 0.0
    %vm685 = vcmp.gt.f32.partialorder %v649, 0.0
    %vm686 = vcmp.gt.f32.partialorder %v651, 0.0
    %vm687 = vcmp.gt.f32.partialorder %v655, 0.0
    %vm688 = vcmp.gt.f32.partialorder %v657, 0.0
    %vm689 = vcmp.gt.f32.partialorder %v659, 0.0
    %vm690 = vcmp.gt.f32.partialorder %v661, 0.0
    %vm691 = vcmp.gt.f32.partialorder %v665, 0.0
    %vm692 = vcmp.gt.f32.partialorder %v667, 0.0
    %vm693 = vcmp.gt.f32.partialorder %v669, 0.0
    %vm694 = vcmp.gt.f32.partialorder %v671, 0.0
    %vm695 = vcmp.gt.f32.partialorder %v675, 0.0
    %vm696 = vcmp.gt.f32.partialorder %v677, 0.0
    %vm697 = vcmp.gt.f32.partialorder %v679, 0.0
    %vm698 = vcmp.gt.f32.partialorder %v681, 0.0
    %v699 = vmul.f32 %v645, 0.01
    %v700 = vmul.f32 %v647, 0.01
    %v701 = vmul.f32 %v649, 0.01
    %v702 = vmul.f32 %v651, 0.01
    %v703 = vmul.f32 %v655, 0.01
    %v704 = vmul.f32 %v657, 0.01
    %v705 = vmul.f32 %v659, 0.01
    %v706 = vmul.f32 %v661, 0.01
    %v707 = vmul.f32 %v665, 0.01
    %v708 = vmul.f32 %v667, 0.01
    %v709 = vmul.f32 %v669, 0.01
    %v710 = vmul.f32 %v671, 0.01
    %v711 = vmul.f32 %v675, 0.01
    %v712 = vmul.f32 %v677, 0.01
    %v713 = vmul.f32 %v679, 0.01
    %v714 = vmul.f32 %v681, 0.01
    %v715 = vsel %vm683, %v645, %v699
    %v716 = vsel %vm684, %v647, %v700
    %v717 = vsel %vm685, %v649, %v701
    %v718 = vsel %vm686, %v651, %v702
    %v719 = vsel %vm687, %v655, %v703
    %v720 = vsel %vm688, %v657, %v704
    %v721 = vsel %vm689, %v659, %v705
    %v722 = vsel %vm690, %v661, %v706
    %v723 = vsel %vm691, %v665, %v707
    %v724 = vsel %vm692, %v667, %v708
    %v725 = vsel %vm693, %v669, %v709
    %v726 = vsel %vm694, %v671, %v710
    %v727 = vsel %vm695, %v675, %v711
    %v728 = vsel %vm696, %v677, %v712
    %v729 = vsel %vm697, %v679, %v713
    %v730 = vsel %vm698, %v681, %v714
    %s731 = scalar_lea.vmem [#allocation2], 96
    %v732 = vld [vmem:[%s731] sm:$0xf]
    %v733 = vld [vmem:[%s731 + $0x4] sm:$0xf]
    %v734 = vld [vmem:[%s731 + $0x8] sm:$0xf]
    %v735 = vld [vmem:[%s731 + $0xc] sm:$0xf]
    %v736 = vld [vmem:[%s731 + $0x10] sm:$0xf]
    %v737 = vld [vmem:[%s731 + $0x14] sm:$0xf]
    %v738 = vld [vmem:[%s731 + $0x18] sm:$0xf]
    %v739 = vld [vmem:[%s731 + $0x1c] sm:$0xf]
    %v740 = vpack.c.bf16 %v717, %v715
    %v741 = vpack.c.bf16 %v718, %v716
    %v742 = vpack.c.bf16 %v721, %v719
    %v743 = vpack.c.bf16 %v722, %v720
    %v744 = vpack.c.bf16 %v725, %v723
    %v745 = vpack.c.bf16 %v726, %v724
    %v746 = vpack.c.bf16 %v729, %v727
    %v747 = vpack.c.bf16 %v730, %v728
    %v756 = vunpack.c.l.b16 %v732
    %v757 = vunpack.c.l.b16 %v733
    %v758 = vunpack.c.l.b16 %v734
    %v759 = vunpack.c.l.b16 %v735
    %v760 = vunpack.c.l.b16 %v736
    %v761 = vunpack.c.l.b16 %v737
    %v762 = vunpack.c.l.b16 %v738
    %v763 = vunpack.c.l.b16 %v739
    %v764 = vpack.c.b16 %v757, %v756
    %v765 = vpack.c.b16 %v759, %v758
    %v766 = vpack.c.b16 %v761, %v760
    %v767 = vpack.c.b16 %v763, %v762
    %v769 = vsel %vm257, %v764, 0
    %v772 = vsel %vm257, %v765, 0
    %v775 = vsel %vm257, %v766, 0
    %v778 = vsel %vm257, %v767, 0
    %780 = vmatprep.subr.bf16.mxu0 %v741
    %781 = vmatpush1.bf16.msra.mxu0 %v740
    %782 = vmatprep.subr.bf16.mxu0 %v743
    %783 = vmatpush1.bf16.msra.mxu0 %v742
    %784 = vmatprep.subr.bf16.mxu0 %v745
    %785 = vmatpush1.bf16.msra.mxu0 %v744
    %786 = vmatprep.subr.bf16.mxu0 %v747
    %787 = vmatpush1.bf16.msra.mxu0 %v746
    %788 = vmatprep.subr.bf16.mxu0 0
    %789 = vmatpush1.bf16.msra.mxu0 0
    %790 = vmatprep.subr.bf16.mxu0 0
    %791 = vmatpush1.bf16.msra.mxu0 0
    %792 = vmatprep.subr.bf16.mxu0 0
    %793 = vmatpush1.bf16.msra.mxu0 0
    %794 = vmatprep.subr.bf16.mxu0 0
    %795 = vmatpush1.bf16.msra.mxu0 0
    %796 = vmatprep.subr.bf16.mxu0 0
    %797 = vmatpush1.bf16.msra.mxu0 0
    %798 = vmatprep.subr.bf16.mxu0 0
    %799 = vmatpush1.bf16.msra.mxu0 0
    %800 = vmatprep.subr.bf16.mxu0 0
    %801 = vmatpush1.bf16.msra.mxu0 0
    %802 = vmatprep.subr.bf16.mxu0 0
    %803 = vmatpush1.bf16.msra.mxu0 0
    %804 = vmatprep.subr.bf16.mxu0 0
    %805 = vmatpush1.bf16.msra.mxu0 0
    %806 = vmatprep.subr.bf16.mxu0 0
    %807 = vmatpush1.bf16.msra.mxu0 0
    %808 = vmatprep.subr.bf16.mxu0 0
    %809 = vmatpush1.bf16.msra.mxu0 0
    %810 = vmatprep.subr.bf16.mxu0 0
    %811 = vmatpush1.bf16.msra.mxu0 0
    %812 = vmatprep.mubr.bf16.mxu0 0
    %813 = vmatmul.mubr.bf16.gmra.mrb[0].mxu0 %v769
    %v814 = vpop.f32.mrb[0].mxu0
    %v815 = vadd.f32 0.0, %v814
    %v816 = vpop.f32.mrb[0].mxu0
    %v817 = vadd.f32 0.0, %v816
    %v818 = vpop.f32.mrb[0].mxu0
    %v819 = vadd.f32 0.0, %v818
    %v820 = vpop.f32.mrb[0].mxu0
    %v821 = vadd.f32 0.0, %v820
    %822 = vmatprep.mubr.bf16.mxu0 0
    %823 = vmatmul.mubr.bf16.gmra.mrb[0].mxu0 %v772
    %v824 = vpop.f32.mrb[0].mxu0
    %v825 = vadd.f32 0.0, %v824
    %v826 = vpop.f32.mrb[0].mxu0
    %v827 = vadd.f32 0.0, %v826
    %v828 = vpop.f32.mrb[0].mxu0
    %v829 = vadd.f32 0.0, %v828
    %v830 = vpop.f32.mrb[0].mxu0
    %v831 = vadd.f32 0.0, %v830
    %832 = vmatprep.mubr.bf16.mxu0 0
    %833 = vmatmul.mubr.bf16.gmra.mrb[0].mxu0 %v775
    %v834 = vpop.f32.mrb[0].mxu0
    %v835 = vadd.f32 0.0, %v834
    %v836 = vpop.f32.mrb[0].mxu0
    %v837 = vadd.f32 0.0, %v836
    %v838 = vpop.f32.mrb[0].mxu0
    %v839 = vadd.f32 0.0, %v838
    %v840 = vpop.f32.mrb[0].mxu0
    %v841 = vadd.f32 0.0, %v840
    %842 = vmatprep.mubr.bf16.mxu0 0
    %843 = vmatmul.mubr.bf16.gmra.mrb[0].mxu0 %v778
    %v844 = vpop.f32.mrb[0].mxu0
    %v845 = vadd.f32 0.0, %v844
    %v846 = vpop.f32.mrb[0].mxu0
    %v847 = vadd.f32 0.0, %v846
    %v848 = vpop.f32.mrb[0].mxu0
    %v849 = vadd.f32 0.0, %v848
    %v850 = vpop.f32.mrb[0].mxu0
    %v851 = vadd.f32 0.0, %v850
    %852 = vdwg.mxu0
    %vm853 = vcmp.gt.f32.partialorder %v815, 0.0
    %vm854 = vcmp.gt.f32.partialorder %v817, 0.0
    %vm855 = vcmp.gt.f32.partialorder %v819, 0.0
    %vm856 = vcmp.gt.f32.partialorder %v821, 0.0
    %vm857 = vcmp.gt.f32.partialorder %v825, 0.0
    %vm858 = vcmp.gt.f32.partialorder %v827, 0.0
    %vm859 = vcmp.gt.f32.partialorder %v829, 0.0
    %vm860 = vcmp.gt.f32.partialorder %v831, 0.0
    %vm861 = vcmp.gt.f32.partialorder %v835, 0.0
    %vm862 = vcmp.gt.f32.partialorder %v837, 0.0
    %vm863 = vcmp.gt.f32.partialorder %v839, 0.0
    %vm864 = vcmp.gt.f32.partialorder %v841, 0.0
    %vm865 = vcmp.gt.f32.partialorder %v845, 0.0
    %vm866 = vcmp.gt.f32.partialorder %v847, 0.0
    %vm867 = vcmp.gt.f32.partialorder %v849, 0.0
    %vm868 = vcmp.gt.f32.partialorder %v851, 0.0
    %v869 = vmul.f32 %v815, 0.01
    %v870 = vmul.f32 %v817, 0.01
    %v871 = vmul.f32 %v819, 0.01
    %v872 = vmul.f32 %v821, 0.01
    %v873 = vmul.f32 %v825, 0.01
    %v874 = vmul.f32 %v827, 0.01
    %v875 = vmul.f32 %v829, 0.01
    %v876 = vmul.f32 %v831, 0.01
    %v877 = vmul.f32 %v835, 0.01
    %v878 = vmul.f32 %v837, 0.01
    %v879 = vmul.f32 %v839, 0.01
    %v880 = vmul.f32 %v841, 0.01
    %v881 = vmul.f32 %v845, 0.01
    %v882 = vmul.f32 %v847, 0.01
    %v883 = vmul.f32 %v849, 0.01
    %v884 = vmul.f32 %v851, 0.01
    %v885 = vsel %vm853, %v815, %v869
    %v886 = vsel %vm854, %v817, %v870
    %v887 = vsel %vm855, %v819, %v871
    %v888 = vsel %vm856, %v821, %v872
    %v889 = vsel %vm857, %v825, %v873
    %v890 = vsel %vm858, %v827, %v874
    %v891 = vsel %vm859, %v829, %v875
    %v892 = vsel %vm860, %v831, %v876
    %v893 = vsel %vm861, %v835, %v877
    %v894 = vsel %vm862, %v837, %v878
    %v895 = vsel %vm863, %v839, %v879
    %v896 = vsel %vm864, %v841, %v880
    %v897 = vsel %vm865, %v845, %v881
    %v898 = vsel %vm866, %v847, %v882
    %v899 = vsel %vm867, %v849, %v883
    %v900 = vsel %vm868, %v851, %v884
    %s901 = scalar_lea.vmem [#allocation2], 128
    %v902 = vld [vmem:[%s901] sm:$0xf]
    %v903 = vld [vmem:[%s901 + $0x4] sm:$0xf]
    %v904 = vld [vmem:[%s901 + $0x8] sm:$0xf]
    %v905 = vld [vmem:[%s901 + $0xc] sm:$0xf]
    %v906 = vld [vmem:[%s901 + $0x10] sm:$0xf]
    %v907 = vld [vmem:[%s901 + $0x14] sm:$0xf]
    %v908 = vld [vmem:[%s901 + $0x18] sm:$0xf]
    %v909 = vld [vmem:[%s901 + $0x1c] sm:$0xf]
    %v910 = vpack.c.bf16 %v887, %v885
    %v911 = vpack.c.bf16 %v888, %v886
    %v912 = vpack.c.bf16 %v891, %v889
    %v913 = vpack.c.bf16 %v892, %v890
    %v914 = vpack.c.bf16 %v895, %v893
    %v915 = vpack.c.bf16 %v896, %v894
    %v916 = vpack.c.bf16 %v899, %v897
    %v917 = vpack.c.bf16 %v900, %v898
    %v926 = vunpack.c.l.b16 %v902
    %v927 = vunpack.c.l.b16 %v903
    %v928 = vunpack.c.l.b16 %v904
    %v929 = vunpack.c.l.b16 %v905
    %v930 = vunpack.c.l.b16 %v906
    %v931 = vunpack.c.l.b16 %v907
    %v932 = vunpack.c.l.b16 %v908
    %v933 = vunpack.c.l.b16 %v909
    %v934 = vpack.c.b16 %v927, %v926
    %v935 = vpack.c.b16 %v929, %v928
    %v936 = vpack.c.b16 %v931, %v930
    %v937 = vpack.c.b16 %v933, %v932
    %v939 = vsel %vm257, %v934, 0
    %v942 = vsel %vm257, %v935, 0
    %v945 = vsel %vm257, %v936, 0
    %v948 = vsel %vm257, %v937, 0
    %950 = vmatprep.subr.bf16.mxu0 %v911
    %951 = vmatpush1.bf16.msra.mxu0 %v910
    %952 = vmatprep.subr.bf16.mxu0 %v913
    %953 = vmatpush1.bf16.msra.mxu0 %v912
    %954 = vmatprep.subr.bf16.mxu0 %v915
    %955 = vmatpush1.bf16.msra.mxu0 %v914
    %956 = vmatprep.subr.bf16.mxu0 %v917
    %957 = vmatpush1.bf16.msra.mxu0 %v916
    %958 = vmatprep.subr.bf16.mxu0 0
    %959 = vmatpush1.bf16.msra.mxu0 0
    %960 = vmatprep.subr.bf16.mxu0 0
    %961 = vmatpush1.bf16.msra.mxu0 0
    %962 = vmatprep.subr.bf16.mxu0 0
    %963 = vmatpush1.bf16.msra.mxu0 0
    %964 = vmatprep.subr.bf16.mxu0 0
    %965 = vmatpush1.bf16.msra.mxu0 0
    %966 = vmatprep.subr.bf16.mxu0 0
    %967 = vmatpush1.bf16.msra.mxu0 0
    %968 = vmatprep.subr.bf16.mxu0 0
    %969 = vmatpush1.bf16.msra.mxu0 0
    %970 = vmatprep.subr.bf16.mxu0 0
    %971 = vmatpush1.bf16.msra.mxu0 0
    %972 = vmatprep.subr.bf16.mxu0 0
    %973 = vmatpush1.bf16.msra.mxu0 0
    %974 = vmatprep.subr.bf16.mxu0 0
    %975 = vmatpush1.bf16.msra.mxu0 0
    %976 = vmatprep.subr.bf16.mxu0 0
    %977 = vmatpush1.bf16.msra.mxu0 0
    %978 = vmatprep.subr.bf16.mxu0 0
    %979 = vmatpush1.bf16.msra.mxu0 0
    %980 = vmatprep.subr.bf16.mxu0 0
    %981 = vmatpush1.bf16.msra.mxu0 0
    %982 = vmatprep.mubr.bf16.mxu0 0
    %983 = vmatmul.mubr.bf16.gmra.mrb[0].mxu0 %v939
    %v984 = vpop.f32.mrb[0].mxu0
    %v985 = vadd.f32 0.0, %v984
    %v986 = vpop.f32.mrb[0].mxu0
    %v987 = vadd.f32 0.0, %v986
    %v988 = vpop.f32.mrb[0].mxu0
    %v989 = vadd.f32 0.0, %v988
    %v990 = vpop.f32.mrb[0].mxu0
    %v991 = vadd.f32 0.0, %v990
    %992 = vmatprep.mubr.bf16.mxu0 0
    %993 = vmatmul.mubr.bf16.gmra.mrb[0].mxu0 %v942
    %v994 = vpop.f32.mrb[0].mxu0
    %v995 = vadd.f32 0.0, %v994
    %v996 = vpop.f32.mrb[0].mxu0
    %v997 = vadd.f32 0.0, %v996
    %v998 = vpop.f32.mrb[0].mxu0
    %v999 = vadd.f32 0.0, %v998
    %v1000 = vpop.f32.mrb[0].mxu0
    %v1001 = vadd.f32 0.0, %v1000
    %1002 = vmatprep.mubr.bf16.mxu0 0
    %1003 = vmatmul.mubr.bf16.gmra.mrb[0].mxu0 %v945
    %v1004 = vpop.f32.mrb[0].mxu0
    %v1005 = vadd.f32 0.0, %v1004
    %v1006 = vpop.f32.mrb[0].mxu0
    %v1007 = vadd.f32 0.0, %v1006
    %v1008 = vpop.f32.mrb[0].mxu0
    %v1009 = vadd.f32 0.0, %v1008
    %v1010 = vpop.f32.mrb[0].mxu0
    %v1011 = vadd.f32 0.0, %v1010
    %1012 = vmatprep.mubr.bf16.mxu0 0
    %1013 = vmatmul.mubr.bf16.gmra.mrb[0].mxu0 %v948
    %v1014 = vpop.f32.mrb[0].mxu0
    %v1015 = vadd.f32 0.0, %v1014
    %v1016 = vpop.f32.mrb[0].mxu0
    %v1017 = vadd.f32 0.0, %v1016
    %v1018 = vpop.f32.mrb[0].mxu0
    %v1019 = vadd.f32 0.0, %v1018
    %v1020 = vpop.f32.mrb[0].mxu0
    %v1021 = vadd.f32 0.0, %v1020
    %1022 = vdwg.mxu0
    %vm1023 = vcmp.gt.f32.partialorder %v985, 0.0
    %vm1024 = vcmp.gt.f32.partialorder %v987, 0.0
    %vm1025 = vcmp.gt.f32.partialorder %v989, 0.0
    %vm1026 = vcmp.gt.f32.partialorder %v991, 0.0
    %vm1027 = vcmp.gt.f32.partialorder %v995, 0.0
    %vm1028 = vcmp.gt.f32.partialorder %v997, 0.0
    %vm1029 = vcmp.gt.f32.partialorder %v999, 0.0
    %vm1030 = vcmp.gt.f32.partialorder %v1001, 0.0
    %vm1031 = vcmp.gt.f32.partialorder %v1005, 0.0
    %vm1032 = vcmp.gt.f32.partialorder %v1007, 0.0
    %vm1033 = vcmp.gt.f32.partialorder %v1009, 0.0
    %vm1034 = vcmp.gt.f32.partialorder %v1011, 0.0
    %vm1035 = vcmp.gt.f32.partialorder %v1015, 0.0
    %vm1036 = vcmp.gt.f32.partialorder %v1017, 0.0
    %vm1037 = vcmp.gt.f32.partialorder %v1019, 0.0
    %vm1038 = vcmp.gt.f32.partialorder %v1021, 0.0
    %v1039 = vmul.f32 %v985, 0.01
    %v1040 = vmul.f32 %v987, 0.01
    %v1041 = vmul.f32 %v989, 0.01
    %v1042 = vmul.f32 %v991, 0.01
    %v1043 = vmul.f32 %v995, 0.01
    %v1044 = vmul.f32 %v997, 0.01
    %v1045 = vmul.f32 %v999, 0.01
    %v1046 = vmul.f32 %v1001, 0.01
    %v1047 = vmul.f32 %v1005, 0.01
    %v1048 = vmul.f32 %v1007, 0.01
    %v1049 = vmul.f32 %v1009, 0.01
    %v1050 = vmul.f32 %v1011, 0.01
    %v1051 = vmul.f32 %v1015, 0.01
    %v1052 = vmul.f32 %v1017, 0.01
    %v1053 = vmul.f32 %v1019, 0.01
    %v1054 = vmul.f32 %v1021, 0.01
    %v1055 = vsel %vm1023, %v985, %v1039
    %v1056 = vsel %vm1024, %v987, %v1040
    %v1057 = vsel %vm1025, %v989, %v1041
    %v1058 = vsel %vm1026, %v991, %v1042
    %v1059 = vsel %vm1027, %v995, %v1043
    %v1060 = vsel %vm1028, %v997, %v1044
    %v1061 = vsel %vm1029, %v999, %v1045
    %v1062 = vsel %vm1030, %v1001, %v1046
    %v1063 = vsel %vm1031, %v1005, %v1047
    %v1064 = vsel %vm1032, %v1007, %v1048
    %v1065 = vsel %vm1033, %v1009, %v1049
    %v1066 = vsel %vm1034, %v1011, %v1050
    %v1067 = vsel %vm1035, %v1015, %v1051
    %v1068 = vsel %vm1036, %v1017, %v1052
    %v1069 = vsel %vm1037, %v1019, %v1053
    %v1070 = vsel %vm1038, %v1021, %v1054
    %s1071 = scalar_lea.vmem [#allocation2], 160
    %v1072 = vld [vmem:[%s1071] sm:$0xf]
    %v1073 = vld [vmem:[%s1071 + $0x4] sm:$0xf]
    %v1074 = vld [vmem:[%s1071 + $0x8] sm:$0xf]
    %v1075 = vld [vmem:[%s1071 + $0xc] sm:$0xf]
    %v1076 = vld [vmem:[%s1071 + $0x10] sm:$0xf]
    %v1077 = vld [vmem:[%s1071 + $0x14] sm:$0xf]
    %v1078 = vld [vmem:[%s1071 + $0x18] sm:$0xf]
    %v1079 = vld [vmem:[%s1071 + $0x1c] sm:$0xf]
    %v1080 = vpack.c.bf16 %v1057, %v1055
    %v1081 = vpack.c.bf16 %v1058, %v1056
    %v1082 = vpack.c.bf16 %v1061, %v1059
    %v1083 = vpack.c.bf16 %v1062, %v1060
    %v1084 = vpack.c.bf16 %v1065, %v1063
    %v1085 = vpack.c.bf16 %v1066, %v1064
    %v1086 = vpack.c.bf16 %v1069, %v1067
    %v1087 = vpack.c.bf16 %v1070, %v1068
    %v1096 = vunpack.c.l.b16 %v1072
    %v1097 = vunpack.c.l.b16 %v1073
    %v1098 = vunpack.c.l.b16 %v1074
    %v1099 = vunpack.c.l.b16 %v1075
    %v1100 = vunpack.c.l.b16 %v1076
    %v1101 = vunpack.c.l.b16 %v1077
    %v1102 = vunpack.c.l.b16 %v1078
    %v1103 = vunpack.c.l.b16 %v1079
    %v1104 = vpack.c.b16 %v1097, %v1096
    %v1105 = vpack.c.b16 %v1099, %v1098
    %v1106 = vpack.c.b16 %v1101, %v1100
    %v1107 = vpack.c.b16 %v1103, %v1102
    %v1109 = vsel %vm257, %v1104, 0
    %v1112 = vsel %vm257, %v1105, 0
    %v1115 = vsel %vm257, %v1106, 0
    %v1118 = vsel %vm257, %v1107, 0
    %1120 = vmatprep.subr.bf16.mxu0 %v1081
    %1121 = vmatpush1.bf16.msra.mxu0 %v1080
    %1122 = vmatprep.subr.bf16.mxu0 %v1083
    %1123 = vmatpush1.bf16.msra.mxu0 %v1082
    %1124 = vmatprep.subr.bf16.mxu0 %v1085
    %1125 = vmatpush1.bf16.msra.mxu0 %v1084
    %1126 = vmatprep.subr.bf16.mxu0 %v1087
    %1127 = vmatpush1.bf16.msra.mxu0 %v1086
    %1128 = vmatprep.subr.bf16.mxu0 0
    %1129 = vmatpush1.bf16.msra.mxu0 0
    %1130 = vmatprep.subr.bf16.mxu0 0
    %1131 = vmatpush1.bf16.msra.mxu0 0
    %1132 = vmatprep.subr.bf16.mxu0 0
    %1133 = vmatpush1.bf16.msra.mxu0 0
    %1134 = vmatprep.subr.bf16.mxu0 0
    %1135 = vmatpush1.bf16.msra.mxu0 0
    %1136 = vmatprep.subr.bf16.mxu0 0
    %1137 = vmatpush1.bf16.msra.mxu0 0
    %1138 = vmatprep.subr.bf16.mxu0 0
    %1139 = vmatpush1.bf16.msra.mxu0 0
    %1140 = vmatprep.subr.bf16.mxu0 0
    %1141 = vmatpush1.bf16.msra.mxu0 0
    %1142 = vmatprep.subr.bf16.mxu0 0
    %1143 = vmatpush1.bf16.msra.mxu0 0
    %1144 = vmatprep.subr.bf16.mxu0 0
    %1145 = vmatpush1.bf16.msra.mxu0 0
    %1146 = vmatprep.subr.bf16.mxu0 0
    %1147 = vmatpush1.bf16.msra.mxu0 0
    %1148 = vmatprep.subr.bf16.mxu0 0
    %1149 = vmatpush1.bf16.msra.mxu0 0
    %1150 = vmatprep.subr.bf16.mxu0 0
    %1151 = vmatpush1.bf16.msra.mxu0 0
    %1152 = vmatprep.mubr.bf16.mxu0 0
    %1153 = vmatmul.mubr.bf16.gmra.mrb[0].mxu0 %v1109
    %v1154 = vpop.f32.mrb[0].mxu0
    %v1155 = vadd.f32 0.0, %v1154
    %v1156 = vpop.f32.mrb[0].mxu0
    %v1157 = vadd.f32 0.0, %v1156
    %v1158 = vpop.f32.mrb[0].mxu0
    %v1159 = vadd.f32 0.0, %v1158
    %v1160 = vpop.f32.mrb[0].mxu0
    %v1161 = vadd.f32 0.0, %v1160
    %1162 = vmatprep.mubr.bf16.mxu0 0
    %1163 = vmatmul.mubr.bf16.gmra.mrb[0].mxu0 %v1112
    %v1164 = vpop.f32.mrb[0].mxu0
    %v1165 = vadd.f32 0.0, %v1164
    %v1166 = vpop.f32.mrb[0].mxu0
    %v1167 = vadd.f32 0.0, %v1166
    %v1168 = vpop.f32.mrb[0].mxu0
    %v1169 = vadd.f32 0.0, %v1168
    %v1170 = vpop.f32.mrb[0].mxu0
    %v1171 = vadd.f32 0.0, %v1170
    %1172 = vmatprep.mubr.bf16.mxu0 0
    %1173 = vmatmul.mubr.bf16.gmra.mrb[0].mxu0 %v1115
    %v1174 = vpop.f32.mrb[0].mxu0
    %v1175 = vadd.f32 0.0, %v1174
    %v1176 = vpop.f32.mrb[0].mxu0
    %v1177 = vadd.f32 0.0, %v1176
    %v1178 = vpop.f32.mrb[0].mxu0
    %v1179 = vadd.f32 0.0, %v1178
    %v1180 = vpop.f32.mrb[0].mxu0
    %v1181 = vadd.f32 0.0, %v1180
    %1182 = vmatprep.mubr.bf16.mxu0 0
    %1183 = vmatmul.mubr.bf16.gmra.mrb[0].mxu0 %v1118
    %v1184 = vpop.f32.mrb[0].mxu0
    %v1185 = vadd.f32 0.0, %v1184
    %v1186 = vpop.f32.mrb[0].mxu0
    %v1187 = vadd.f32 0.0, %v1186
    %v1188 = vpop.f32.mrb[0].mxu0
    %v1189 = vadd.f32 0.0, %v1188
    %v1190 = vpop.f32.mrb[0].mxu0
    %v1191 = vadd.f32 0.0, %v1190
    %1192 = vdwg.mxu0
    %vm1193 = vcmp.gt.f32.partialorder %v1155, 0.0
    %vm1194 = vcmp.gt.f32.partialorder %v1157, 0.0
    %vm1195 = vcmp.gt.f32.partialorder %v1159, 0.0
    %vm1196 = vcmp.gt.f32.partialorder %v1161, 0.0
    %vm1197 = vcmp.gt.f32.partialorder %v1165, 0.0
    %vm1198 = vcmp.gt.f32.partialorder %v1167, 0.0
    %vm1199 = vcmp.gt.f32.partialorder %v1169, 0.0
    %vm1200 = vcmp.gt.f32.partialorder %v1171, 0.0
    %vm1201 = vcmp.gt.f32.partialorder %v1175, 0.0
    %vm1202 = vcmp.gt.f32.partialorder %v1177, 0.0
    %vm1203 = vcmp.gt.f32.partialorder %v1179, 0.0
    %vm1204 = vcmp.gt.f32.partialorder %v1181, 0.0
    %vm1205 = vcmp.gt.f32.partialorder %v1185, 0.0
    %vm1206 = vcmp.gt.f32.partialorder %v1187, 0.0
    %vm1207 = vcmp.gt.f32.partialorder %v1189, 0.0
    %vm1208 = vcmp.gt.f32.partialorder %v1191, 0.0
    %v1209 = vmul.f32 %v1155, 0.01
    %v1210 = vmul.f32 %v1157, 0.01
    %v1211 = vmul.f32 %v1159, 0.01
    %v1212 = vmul.f32 %v1161, 0.01
    %v1213 = vmul.f32 %v1165, 0.01
    %v1214 = vmul.f32 %v1167, 0.01
    %v1215 = vmul.f32 %v1169, 0.01
    %v1216 = vmul.f32 %v1171, 0.01
    %v1217 = vmul.f32 %v1175, 0.01
    %v1218 = vmul.f32 %v1177, 0.01
    %v1219 = vmul.f32 %v1179, 0.01
    %v1220 = vmul.f32 %v1181, 0.01
    %v1221 = vmul.f32 %v1185, 0.01
    %v1222 = vmul.f32 %v1187, 0.01
    %v1223 = vmul.f32 %v1189, 0.01
    %v1224 = vmul.f32 %v1191, 0.01
    %v1225 = vsel %vm1193, %v1155, %v1209
    %v1226 = vsel %vm1194, %v1157, %v1210
    %v1227 = vsel %vm1195, %v1159, %v1211
    %v1228 = vsel %vm1196, %v1161, %v1212
    %v1229 = vsel %vm1197, %v1165, %v1213
    %v1230 = vsel %vm1198, %v1167, %v1214
    %v1231 = vsel %vm1199, %v1169, %v1215
    %v1232 = vsel %vm1200, %v1171, %v1216
    %v1233 = vsel %vm1201, %v1175, %v1217
    %v1234 = vsel %vm1202, %v1177, %v1218
    %v1235 = vsel %vm1203, %v1179, %v1219
    %v1236 = vsel %vm1204, %v1181, %v1220
    %v1237 = vsel %vm1205, %v1185, %v1221
    %v1238 = vsel %vm1206, %v1187, %v1222
    %v1239 = vsel %vm1207, %v1189, %v1223
    %v1240 = vsel %vm1208, %v1191, %v1224
    %s1241 = scalar_lea.vmem [#allocation2], 192
    %v1242 = vld [vmem:[%s1241] sm:$0xf]
    %v1243 = vld [vmem:[%s1241 + $0x4] sm:$0xf]
    %v1244 = vld [vmem:[%s1241 + $0x8] sm:$0xf]
    %v1245 = vld [vmem:[%s1241 + $0xc] sm:$0xf]
    %v1246 = vld [vmem:[%s1241 + $0x10] sm:$0xf]
    %v1247 = vld [vmem:[%s1241 + $0x14] sm:$0xf]
    %v1248 = vld [vmem:[%s1241 + $0x18] sm:$0xf]
    %v1249 = vld [vmem:[%s1241 + $0x1c] sm:$0xf]
    %v1250 = vpack.c.bf16 %v1227, %v1225
    %v1251 = vpack.c.bf16 %v1228, %v1226
    %v1252 = vpack.c.bf16 %v1231, %v1229
    %v1253 = vpack.c.bf16 %v1232, %v1230
    %v1254 = vpack.c.bf16 %v1235, %v1233
    %v1255 = vpack.c.bf16 %v1236, %v1234
    %v1256 = vpack.c.bf16 %v1239, %v1237
    %v1257 = vpack.c.bf16 %v1240, %v1238
    %v1266 = vunpack.c.l.b16 %v1242
    %v1267 = vunpack.c.l.b16 %v1243
    %v1268 = vunpack.c.l.b16 %v1244
    %v1269 = vunpack.c.l.b16 %v1245
    %v1270 = vunpack.c.l.b16 %v1246
    %v1271 = vunpack.c.l.b16 %v1247
    %v1272 = vunpack.c.l.b16 %v1248
    %v1273 = vunpack.c.l.b16 %v1249
    %v1274 = vpack.c.b16 %v1267, %v1266
    %v1275 = vpack.c.b16 %v1269, %v1268
    %v1276 = vpack.c.b16 %v1271, %v1270
    %v1277 = vpack.c.b16 %v1273, %v1272
    %v1279 = vsel %vm257, %v1274, 0
    %v1282 = vsel %vm257, %v1275, 0
    %v1285 = vsel %vm257, %v1276, 0
    %v1288 = vsel %vm257, %v1277, 0
    %1290 = vmatprep.subr.bf16.mxu0 %v1251
    %1291 = vmatpush1.bf16.msra.mxu0 %v1250
    %1292 = vmatprep.subr.bf16.mxu0 %v1253
    %1293 = vmatpush1.bf16.msra.mxu0 %v1252
    %1294 = vmatprep.subr.bf16.mxu0 %v1255
    %1295 = vmatpush1.bf16.msra.mxu0 %v1254
    %1296 = vmatprep.subr.bf16.mxu0 %v1257
    %1297 = vmatpush1.bf16.msra.mxu0 %v1256
    %1298 = vmatprep.subr.bf16.mxu0 0
    %1299 = vmatpush1.bf16.msra.mxu0 0
    %1300 = vmatprep.subr.bf16.mxu0 0
    %1301 = vmatpush1.bf16.msra.mxu0 0
    %1302 = vmatprep.subr.bf16.mxu0 0
    %1303 = vmatpush1.bf16.msra.mxu0 0
    %1304 = vmatprep.subr.bf16.mxu0 0
    %1305 = vmatpush1.bf16.msra.mxu0 0
    %1306 = vmatprep.subr.bf16.mxu0 0
    %1307 = vmatpush1.bf16.msra.mxu0 0
    %1308 = vmatprep.subr.bf16.mxu0 0
    %1309 = vmatpush1.bf16.msra.mxu0 0
    %1310 = vmatprep.subr.bf16.mxu0 0
    %1311 = vmatpush1.bf16.msra.mxu0 0
    %1312 = vmatprep.subr.bf16.mxu0 0
    %1313 = vmatpush1.bf16.msra.mxu0 0
    %1314 = vmatprep.subr.bf16.mxu0 0
    %1315 = vmatpush1.bf16.msra.mxu0 0
    %1316 = vmatprep.subr.bf16.mxu0 0
    %1317 = vmatpush1.bf16.msra.mxu0 0
    %1318 = vmatprep.subr.bf16.mxu0 0
    %1319 = vmatpush1.bf16.msra.mxu0 0
    %1320 = vmatprep.subr.bf16.mxu0 0
    %1321 = vmatpush1.bf16.msra.mxu0 0
    %1322 = vmatprep.mubr.bf16.mxu0 0
    %1323 = vmatmul.mubr.bf16.gmra.mrb[0].mxu0 %v1279
    %v1324 = vpop.f32.mrb[0].mxu0
    %v1325 = vadd.f32 0.0, %v1324
    %v1326 = vpop.f32.mrb[0].mxu0
    %v1327 = vadd.f32 0.0, %v1326
    %v1328 = vpop.f32.mrb[0].mxu0
    %v1329 = vadd.f32 0.0, %v1328
    %v1330 = vpop.f32.mrb[0].mxu0
    %v1331 = vadd.f32 0.0, %v1330
    %1332 = vmatprep.mubr.bf16.mxu0 0
    %1333 = vmatmul.mubr.bf16.gmra.mrb[0].mxu0 %v1282
    %v1334 = vpop.f32.mrb[0].mxu0
    %v1335 = vadd.f32 0.0, %v1334
    %v1336 = vpop.f32.mrb[0].mxu0
    %v1337 = vadd.f32 0.0, %v1336
    %v1338 = vpop.f32.mrb[0].mxu0
    %v1339 = vadd.f32 0.0, %v1338
    %v1340 = vpop.f32.mrb[0].mxu0
    %v1341 = vadd.f32 0.0, %v1340
    %1342 = vmatprep.mubr.bf16.mxu0 0
    %1343 = vmatmul.mubr.bf16.gmra.mrb[0].mxu0 %v1285
    %v1344 = vpop.f32.mrb[0].mxu0
    %v1345 = vadd.f32 0.0, %v1344
    %v1346 = vpop.f32.mrb[0].mxu0
    %v1347 = vadd.f32 0.0, %v1346
    %v1348 = vpop.f32.mrb[0].mxu0
    %v1349 = vadd.f32 0.0, %v1348
    %v1350 = vpop.f32.mrb[0].mxu0
    %v1351 = vadd.f32 0.0, %v1350
    %1352 = vmatprep.mubr.bf16.mxu0 0
    %1353 = vmatmul.mubr.bf16.gmra.mrb[0].mxu0 %v1288
    %v1354 = vpop.f32.mrb[0].mxu0
    %v1355 = vadd.f32 0.0, %v1354
    %v1356 = vpop.f32.mrb[0].mxu0
    %v1357 = vadd.f32 0.0, %v1356
    %v1358 = vpop.f32.mrb[0].mxu0
    %v1359 = vadd.f32 0.0, %v1358
    %v1360 = vpop.f32.mrb[0].mxu0
    %v1361 = vadd.f32 0.0, %v1360
    %1362 = vdwg.mxu0
    %vm1363 = vcmp.gt.f32.partialorder %v1325, 0.0
    %vm1364 = vcmp.gt.f32.partialorder %v1327, 0.0
    %vm1365 = vcmp.gt.f32.partialorder %v1329, 0.0
    %vm1366 = vcmp.gt.f32.partialorder %v1331, 0.0
    %vm1367 = vcmp.gt.f32.partialorder %v1335, 0.0
    %vm1368 = vcmp.gt.f32.partialorder %v1337, 0.0
    %vm1369 = vcmp.gt.f32.partialorder %v1339, 0.0
    %vm1370 = vcmp.gt.f32.partialorder %v1341, 0.0
    %vm1371 = vcmp.gt.f32.partialorder %v1345, 0.0
    %vm1372 = vcmp.gt.f32.partialorder %v1347, 0.0
    %vm1373 = vcmp.gt.f32.partialorder %v1349, 0.0
    %vm1374 = vcmp.gt.f32.partialorder %v1351, 0.0
    %vm1375 = vcmp.gt.f32.partialorder %v1355, 0.0
    %vm1376 = vcmp.gt.f32.partialorder %v1357, 0.0
    %vm1377 = vcmp.gt.f32.partialorder %v1359, 0.0
    %vm1378 = vcmp.gt.f32.partialorder %v1361, 0.0
    %v1379 = vmul.f32 %v1325, 0.01
    %v1380 = vmul.f32 %v1327, 0.01
    %v1381 = vmul.f32 %v1329, 0.01
    %v1382 = vmul.f32 %v1331, 0.01
    %v1383 = vmul.f32 %v1335, 0.01
    %v1384 = vmul.f32 %v1337, 0.01
    %v1385 = vmul.f32 %v1339, 0.01
    %v1386 = vmul.f32 %v1341, 0.01
    %v1387 = vmul.f32 %v1345, 0.01
    %v1388 = vmul.f32 %v1347, 0.01
    %v1389 = vmul.f32 %v1349, 0.01
    %v1390 = vmul.f32 %v1351, 0.01
    %v1391 = vmul.f32 %v1355, 0.01
    %v1392 = vmul.f32 %v1357, 0.01
    %v1393 = vmul.f32 %v1359, 0.01
    %v1394 = vmul.f32 %v1361, 0.01
    %v1395 = vsel %vm1363, %v1325, %v1379
    %v1396 = vsel %vm1364, %v1327, %v1380
    %v1397 = vsel %vm1365, %v1329, %v1381
    %v1398 = vsel %vm1366, %v1331, %v1382
    %v1399 = vsel %vm1367, %v1335, %v1383
    %v1400 = vsel %vm1368, %v1337, %v1384
    %v1401 = vsel %vm1369, %v1339, %v1385
    %v1402 = vsel %vm1370, %v1341, %v1386
    %v1403 = vsel %vm1371, %v1345, %v1387
    %v1404 = vsel %vm1372, %v1347, %v1388
    %v1405 = vsel %vm1373, %v1349, %v1389
    %v1406 = vsel %vm1374, %v1351, %v1390
    %v1407 = vsel %vm1375, %v1355, %v1391
    %v1408 = vsel %vm1376, %v1357, %v1392
    %v1409 = vsel %vm1377, %v1359, %v1393
    %v1410 = vsel %vm1378, %v1361, %v1394
    %s1411 = scalar_lea.vmem [#allocation2], 224
    %v1412 = vld [vmem:[%s1411] sm:$0xf]
    %v1413 = vld [vmem:[%s1411 + $0x4] sm:$0xf]
    %v1414 = vld [vmem:[%s1411 + $0x8] sm:$0xf]
    %v1415 = vld [vmem:[%s1411 + $0xc] sm:$0xf]
    %v1416 = vld [vmem:[%s1411 + $0x10] sm:$0xf]
    %v1417 = vld [vmem:[%s1411 + $0x14] sm:$0xf]
    %v1418 = vld [vmem:[%s1411 + $0x18] sm:$0xf]
    %v1419 = vld [vmem:[%s1411 + $0x1c] sm:$0xf]
    %v1420 = vpack.c.bf16 %v1397, %v1395
    %v1421 = vpack.c.bf16 %v1398, %v1396
    %v1422 = vpack.c.bf16 %v1401, %v1399
    %v1423 = vpack.c.bf16 %v1402, %v1400
    %v1424 = vpack.c.bf16 %v1405, %v1403
    %v1425 = vpack.c.bf16 %v1406, %v1404
    %v1426 = vpack.c.bf16 %v1409, %v1407
    %v1427 = vpack.c.bf16 %v1410, %v1408
    %v1436 = vunpack.c.l.b16 %v1412
    %v1437 = vunpack.c.l.b16 %v1413
    %v1438 = vunpack.c.l.b16 %v1414
    %v1439 = vunpack.c.l.b16 %v1415
    %v1440 = vunpack.c.l.b16 %v1416
    %v1441 = vunpack.c.l.b16 %v1417
    %v1442 = vunpack.c.l.b16 %v1418
    %v1443 = vunpack.c.l.b16 %v1419
    %v1444 = vpack.c.b16 %v1437, %v1436
    %v1445 = vpack.c.b16 %v1439, %v1438
    %v1446 = vpack.c.b16 %v1441, %v1440
    %v1447 = vpack.c.b16 %v1443, %v1442
    %v1449 = vsel %vm257, %v1444, 0
    %v1452 = vsel %vm257, %v1445, 0
    %v1455 = vsel %vm257, %v1446, 0
    %v1458 = vsel %vm257, %v1447, 0
    %1460 = vmatprep.subr.bf16.mxu0 %v1421
    %1461 = vmatpush1.bf16.msra.mxu0 %v1420
    %1462 = vmatprep.subr.bf16.mxu0 %v1423
    %1463 = vmatpush1.bf16.msra.mxu0 %v1422
    %1464 = vmatprep.subr.bf16.mxu0 %v1425
    %1465 = vmatpush1.bf16.msra.mxu0 %v1424
    %1466 = vmatprep.subr.bf16.mxu0 %v1427
    %1467 = vmatpush1.bf16.msra.mxu0 %v1426
    %1468 = vmatprep.subr.bf16.mxu0 0
    %1469 = vmatpush1.bf16.msra.mxu0 0
    %1470 = vmatprep.subr.bf16.mxu0 0
    %1471 = vmatpush1.bf16.msra.mxu0 0
    %1472 = vmatprep.subr.bf16.mxu0 0
    %1473 = vmatpush1.bf16.msra.mxu0 0
    %1474 = vmatprep.subr.bf16.mxu0 0
    %1475 = vmatpush1.bf16.msra.mxu0 0
    %1476 = vmatprep.subr.bf16.mxu0 0
    %1477 = vmatpush1.bf16.msra.mxu0 0
    %1478 = vmatprep.subr.bf16.mxu0 0
    %1479 = vmatpush1.bf16.msra.mxu0 0
    %1480 = vmatprep.subr.bf16.mxu0 0
    %1481 = vmatpush1.bf16.msra.mxu0 0
    %1482 = vmatprep.subr.bf16.mxu0 0
    %1483 = vmatpush1.bf16.msra.mxu0 0
    %1484 = vmatprep.subr.bf16.mxu0 0
    %1485 = vmatpush1.bf16.msra.mxu0 0
    %1486 = vmatprep.subr.bf16.mxu0 0
    %1487 = vmatpush1.bf16.msra.mxu0 0
    %1488 = vmatprep.subr.bf16.mxu0 0
    %1489 = vmatpush1.bf16.msra.mxu0 0
    %1490 = vmatprep.subr.bf16.mxu0 0
    %1491 = vmatpush1.bf16.msra.mxu0 0
    %1492 = vmatprep.mubr.bf16.mxu0 0
    %1493 = vmatmul.mubr.bf16.gmra.mrb[0].mxu0 %v1449
    %v1494 = vpop.f32.mrb[0].mxu0
    %v1495 = vadd.f32 0.0, %v1494
    %v1496 = vpop.f32.mrb[0].mxu0
    %v1497 = vadd.f32 0.0, %v1496
    %v1498 = vpop.f32.mrb[0].mxu0
    %v1499 = vadd.f32 0.0, %v1498
    %v1500 = vpop.f32.mrb[0].mxu0
    %v1501 = vadd.f32 0.0, %v1500
    %1502 = vmatprep.mubr.bf16.mxu0 0
    %1503 = vmatmul.mubr.bf16.gmra.mrb[0].mxu0 %v1452
    %v1504 = vpop.f32.mrb[0].mxu0
    %v1505 = vadd.f32 0.0, %v1504
    %v1506 = vpop.f32.mrb[0].mxu0
    %v1507 = vadd.f32 0.0, %v1506
    %v1508 = vpop.f32.mrb[0].mxu0
    %v1509 = vadd.f32 0.0, %v1508
    %v1510 = vpop.f32.mrb[0].mxu0
    %v1511 = vadd.f32 0.0, %v1510
    %1512 = vmatprep.mubr.bf16.mxu0 0
    %1513 = vmatmul.mubr.bf16.gmra.mrb[0].mxu0 %v1455
    %v1514 = vpop.f32.mrb[0].mxu0
    %v1515 = vadd.f32 0.0, %v1514
    %v1516 = vpop.f32.mrb[0].mxu0
    %v1517 = vadd.f32 0.0, %v1516
    %v1518 = vpop.f32.mrb[0].mxu0
    %v1519 = vadd.f32 0.0, %v1518
    %v1520 = vpop.f32.mrb[0].mxu0
    %v1521 = vadd.f32 0.0, %v1520
    %1522 = vmatprep.mubr.bf16.mxu0 0
    %1523 = vmatmul.mubr.bf16.gmra.mrb[0].mxu0 %v1458
    %v1524 = vpop.f32.mrb[0].mxu0
    %v1525 = vadd.f32 0.0, %v1524
    %v1526 = vpop.f32.mrb[0].mxu0
    %v1527 = vadd.f32 0.0, %v1526
    %v1528 = vpop.f32.mrb[0].mxu0
    %v1529 = vadd.f32 0.0, %v1528
    %v1530 = vpop.f32.mrb[0].mxu0
    %v1531 = vadd.f32 0.0, %v1530
    %1532 = vdwg.mxu0
    %vm1533 = vcmp.gt.f32.partialorder %v1495, 0.0
    %vm1534 = vcmp.gt.f32.partialorder %v1497, 0.0
    %vm1535 = vcmp.gt.f32.partialorder %v1499, 0.0
    %vm1536 = vcmp.gt.f32.partialorder %v1501, 0.0
    %vm1537 = vcmp.gt.f32.partialorder %v1505, 0.0
    %vm1538 = vcmp.gt.f32.partialorder %v1507, 0.0
    %vm1539 = vcmp.gt.f32.partialorder %v1509, 0.0
    %vm1540 = vcmp.gt.f32.partialorder %v1511, 0.0
    %vm1541 = vcmp.gt.f32.partialorder %v1515, 0.0
    %vm1542 = vcmp.gt.f32.partialorder %v1517, 0.0
    %vm1543 = vcmp.gt.f32.partialorder %v1519, 0.0
    %vm1544 = vcmp.gt.f32.partialorder %v1521, 0.0
    %vm1545 = vcmp.gt.f32.partialorder %v1525, 0.0
    %vm1546 = vcmp.gt.f32.partialorder %v1527, 0.0
    %vm1547 = vcmp.gt.f32.partialorder %v1529, 0.0
    %vm1548 = vcmp.gt.f32.partialorder %v1531, 0.0
    %v1549 = vmul.f32 %v1495, 0.01
    %v1550 = vmul.f32 %v1497, 0.01
    %v1551 = vmul.f32 %v1499, 0.01
    %v1552 = vmul.f32 %v1501, 0.01
    %v1553 = vmul.f32 %v1505, 0.01
    %v1554 = vmul.f32 %v1507, 0.01
    %v1555 = vmul.f32 %v1509, 0.01
    %v1556 = vmul.f32 %v1511, 0.01
    %v1557 = vmul.f32 %v1515, 0.01
    %v1558 = vmul.f32 %v1517, 0.01
    %v1559 = vmul.f32 %v1519, 0.01
    %v1560 = vmul.f32 %v1521, 0.01
    %v1561 = vmul.f32 %v1525, 0.01
    %v1562 = vmul.f32 %v1527, 0.01
    %v1563 = vmul.f32 %v1529, 0.01
    %v1564 = vmul.f32 %v1531, 0.01
    %v1565 = vsel %vm1533, %v1495, %v1549
    %v1566 = vsel %vm1534, %v1497, %v1550
    %v1567 = vsel %vm1535, %v1499, %v1551
    %v1568 = vsel %vm1536, %v1501, %v1552
    %v1569 = vsel %vm1537, %v1505, %v1553
    %v1570 = vsel %vm1538, %v1507, %v1554
    %v1571 = vsel %vm1539, %v1509, %v1555
    %v1572 = vsel %vm1540, %v1511, %v1556
    %v1573 = vsel %vm1541, %v1515, %v1557
    %v1574 = vsel %vm1542, %v1517, %v1558
    %v1575 = vsel %vm1543, %v1519, %v1559
    %v1576 = vsel %vm1544, %v1521, %v1560
    %v1577 = vsel %vm1545, %v1525, %v1561
    %v1578 = vsel %vm1546, %v1527, %v1562
    %v1579 = vsel %vm1547, %v1529, %v1563
    %v1580 = vsel %vm1548, %v1531, %v1564
    %s1581 = scalar_lea.vmem [#allocation2], 256
    %v1582 = vld [vmem:[%s1581] sm:$0xf]
    %v1583 = vld [vmem:[%s1581 + $0x4] sm:$0xf]
    %v1584 = vld [vmem:[%s1581 + $0x8] sm:$0xf]
    %v1585 = vld [vmem:[%s1581 + $0xc] sm:$0xf]
    %v1586 = vld [vmem:[%s1581 + $0x10] sm:$0xf]
    %v1587 = vld [vmem:[%s1581 + $0x14] sm:$0xf]
    %v1588 = vld [vmem:[%s1581 + $0x18] sm:$0xf]
    %v1589 = vld [vmem:[%s1581 + $0x1c] sm:$0xf]
    %v1590 = vpack.c.bf16 %v1567, %v1565
    %v1591 = vpack.c.bf16 %v1568, %v1566
    %v1592 = vpack.c.bf16 %v1571, %v1569
    %v1593 = vpack.c.bf16 %v1572, %v1570
    %v1594 = vpack.c.bf16 %v1575, %v1573
    %v1595 = vpack.c.bf16 %v1576, %v1574
    %v1596 = vpack.c.bf16 %v1579, %v1577
    %v1597 = vpack.c.bf16 %v1580, %v1578
    %v1606 = vunpack.c.l.b16 %v1582
    %v1607 = vunpack.c.l.b16 %v1583
    %v1608 = vunpack.c.l.b16 %v1584
    %v1609 = vunpack.c.l.b16 %v1585
    %v1610 = vunpack.c.l.b16 %v1586
    %v1611 = vunpack.c.l.b16 %v1587
    %v1612 = vunpack.c.l.b16 %v1588
    %v1613 = vunpack.c.l.b16 %v1589
    %v1614 = vpack.c.b16 %v1607, %v1606
    %v1615 = vpack.c.b16 %v1609, %v1608
    %v1616 = vpack.c.b16 %v1611, %v1610
    %v1617 = vpack.c.b16 %v1613, %v1612
    %v1619 = vsel %vm257, %v1614, 0
    %v1622 = vsel %vm257, %v1615, 0
    %v1625 = vsel %vm257, %v1616, 0
    %v1628 = vsel %vm257, %v1617, 0
    %1630 = vmatprep.subr.bf16.mxu0 %v1591
    %1631 = vmatpush1.bf16.msra.mxu0 %v1590
    %1632 = vmatprep.subr.bf16.mxu0 %v1593
    %1633 = vmatpush1.bf16.msra.mxu0 %v1592
    %1634 = vmatprep.subr.bf16.mxu0 %v1595
    %1635 = vmatpush1.bf16.msra.mxu0 %v1594
    %1636 = vmatprep.subr.bf16.mxu0 %v1597
    %1637 = vmatpush1.bf16.msra.mxu0 %v1596
    %1638 = vmatprep.subr.bf16.mxu0 0
    %1639 = vmatpush1.bf16.msra.mxu0 0
    %1640 = vmatprep.subr.bf16.mxu0 0
    %1641 = vmatpush1.bf16.msra.mxu0 0
    %1642 = vmatprep.subr.bf16.mxu0 0
    %1643 = vmatpush1.bf16.msra.mxu0 0
    %1644 = vmatprep.subr.bf16.mxu0 0
    %1645 = vmatpush1.bf16.msra.mxu0 0
    %1646 = vmatprep.subr.bf16.mxu0 0
    %1647 = vmatpush1.bf16.msra.mxu0 0
    %1648 = vmatprep.subr.bf16.mxu0 0
    %1649 = vmatpush1.bf16.msra.mxu0 0
    %1650 = vmatprep.subr.bf16.mxu0 0
    %1651 = vmatpush1.bf16.msra.mxu0 0
    %1652 = vmatprep.subr.bf16.mxu0 0
    %1653 = vmatpush1.bf16.msra.mxu0 0
    %1654 = vmatprep.subr.bf16.mxu0 0
    %1655 = vmatpush1.bf16.msra.mxu0 0
    %1656 = vmatprep.subr.bf16.mxu0 0
    %1657 = vmatpush1.bf16.msra.mxu0 0
    %1658 = vmatprep.subr.bf16.mxu0 0
    %1659 = vmatpush1.bf16.msra.mxu0 0
    %1660 = vmatprep.subr.bf16.mxu0 0
    %1661 = vmatpush1.bf16.msra.mxu0 0
    %1662 = vmatprep.mubr.bf16.mxu0 0
    %1663 = vmatmul.mubr.bf16.gmra.mrb[0].mxu0 %v1619
    %v1664 = vpop.f32.mrb[0].mxu0
    %v1665 = vadd.f32 0.0, %v1664
    %v1666 = vpop.f32.mrb[0].mxu0
    %v1667 = vadd.f32 0.0, %v1666
    %v1668 = vpop.f32.mrb[0].mxu0
    %v1669 = vpop.f32.mrb[0].mxu0
    %1670 = vmatprep.mubr.bf16.mxu0 0
    %1671 = vmatmul.mubr.bf16.gmra.mrb[0].mxu0 %v1622
    %v1672 = vpop.f32.mrb[0].mxu0
    %v1673 = vpop.f32.mrb[0].mxu0
    %v1674 = vpop.f32.mrb[0].mxu0
    %v1675 = vpop.f32.mrb[0].mxu0
    %1676 = vmatprep.mubr.bf16.mxu0 0
    %1677 = vmatmul.mubr.bf16.gmra.mrb[0].mxu0 %v1625
    %v1678 = vpop.f32.mrb[0].mxu0
    %v1679 = vpop.f32.mrb[0].mxu0
    %v1680 = vpop.f32.mrb[0].mxu0
    %v1681 = vpop.f32.mrb[0].mxu0
    %1682 = vmatprep.mubr.bf16.mxu0 0
    %1683 = vmatmul.mubr.bf16.gmra.mrb[0].mxu0 %v1628
    %v1684 = vpop.f32.mrb[0].mxu0
    %v1685 = vpop.f32.mrb[0].mxu0
    %v1686 = vpop.f32.mrb[0].mxu0
    %v1687 = vpop.f32.mrb[0].mxu0
    %1688 = vdwg.mxu0
    %v1691 = vcombine.low %v1665, %v1667
    %v1693 = vunpack.c.l.s4 1966171168
    %v1694 = vunpack.c.0.s8 %v1693
    %v1695 = vlaneseq
    %v1696 = vshrl.u32 %v1695, 7
    %v1697 = vsub.s32 %v1694, %v1696
    %v1698 = vrot.slane %v1691, %v1697
    %v1700 = vunpack.c.l.s4 1966171168
    %v1701 = vunpack.c.0.s8 %v1700
    %v1702 = vlaneseq
    %v1703 = vshrl.u32 %v1702, 7
    %v1704 = vsub.s32 %v1701, %v1703
    %v1705 = vrot.slane %v1698, %v1704
    %v1707 = vlaneseq
    %vm1708 = vcmp.ge.s32.totalorder %v1707, 0
    %vm1709 = vcmp.lt.s32.totalorder %v1707, 256
    %vm1710 = vmand %vm1708, %vm1709
    %1711 = vst.msk [vmem:[#allocation5] sm:$0x3] %vm1710, %v1705
    // Predicated region
    $region22: #{tpu_custom_call.1} parent=1 // pred_check
      _
    $region23: #{tpu_custom_call.1} parent=1 // pred_check_branch
      %1713 = sbr.rel (0) target = $region25
    $region24: #{tpu_custom_call.1} parent=1 // pred_region
      %s1715 = ssub.s32 32, 32
      %1716 = vsyncadd [#allocation4], %s1715
      %s1718 = sshll.u32 [#allocation5], 4
      %s1719 = int_to_ptr.vmem [resolvable:$true] %s1718
      %1721 = dma.vmem_to_hbm [thread:$0]  %s1719, 32, %s4, [#allocation4]
    $region25: #{tpu_custom_call.1} parent=1 // pred_fallthru
      _
    // Predicated region
    $region26: #{tpu_custom_call.1} parent=1 // pred_check
      _
    $region27: #{tpu_custom_call.1} parent=1 // pred_check_branch
      %1723 = sbr.rel (0) target = $region29
    $region28: #{tpu_custom_call.1} parent=1 // pred_region
      %1724 = dma.done [#allocation4], 32
    $region29: #{tpu_custom_call.1} parent=1 // pred_fallthru
      _
    %1725 = vsyncpa [#allocation3], 1
    %1726 = vsyncpa [#allocation4], 1

</llo_original>
